<compile_context>
chip_gen: v5e
topology: v5e:2x2
jax: 0.10.0
libtpu: 0.0.40
codegen_flags: <defaults>
</compile_context>

<pallas_src>
import math
import functools

import jax
import jax.numpy as jnp
from jax.experimental import pallas as pl
from jax.experimental.pallas import tpu as pltpu

# ---------------- small synthetic config ----------------
VOCAB = 64
HIDDEN = 32
LAYERS = 2
HEADS = 2
INTER = 64
MAX_POS = 64
SEQ = 16
BSZ = 2
OPNUM = 2
NOPT = 4
OPLEN = 3
HEAD_DIM = HIDDEN // HEADS
LN_EPS = 1e-12


# ---------------- in-kernel helpers ----------------
def _layernorm(x, gamma, beta):
    # BertLayerNorm: biased variance, eps=1e-12
    u = jnp.mean(x, axis=-1, keepdims=True)
    s = jnp.mean((x - u) ** 2, axis=-1, keepdims=True)
    return (x - u) * jax.lax.rsqrt(s + LN_EPS) * gamma + beta


def _gelu(x):
    # tanh-approximate GELU: runs on the EUP (tanh) instead of a VALU erf polynomial.
    # TODO(synk): small numerics deviation from BERT's exact erf GELU.
    return 0.5 * x * (1.0 + jnp.tanh(0.7978845608028654 * (x + 0.044715 * x * x * x)))


# ========== fused kernel 1: embeddings LayerNorm + full BERT encoder ==========
def _encoder_kernel(emb_ref, mask_ref, eg_ref, eb_ref,
                    wqkv_ref, bqkv_ref, wo_ref, bo_ref, g1_ref, b1_ref,
                    wi_ref, bi_ref, wf_ref, bf_ref, g2_ref, b2_ref,
                    out_ref, *, nH):
    l = pl.program_id(1)
    Dh = HEAD_DIM
    scale = 1.0 / math.sqrt(Dh)

    # Layer 0 (for this batch block): embeddings LayerNorm seeds the resident activation.
    @pl.when(l == 0)
    def _():
        out_ref[...] = _layernorm(emb_ref[...], eg_ref[...], eb_ref[...])

    x = out_ref[...]                       # (S, H) residual stream, resident across layers

    # --- fused QKV projection: one matmul, lane-dense weights ---
    qkv = jnp.dot(x, wqkv_ref[0], preferred_element_type=jnp.float32) + bqkv_ref[0]
    amask = mask_ref[0]                    # (1, S) additive key mask

    # --- multi-head attention, heads statically unrolled (nH is tiny) ---
    ctxs = []
    for h in range(nH):
        q = qkv[:, h * Dh:(h + 1) * Dh]
        k = qkv[:, (nH + h) * Dh:(nH + h + 1) * Dh]
        v = qkv[:, (2 * nH + h) * Dh:(2 * nH + h + 1) * Dh]
        # q @ k^T via dot_general (no explicit transpose of k)
        s = jax.lax.dot_general(q, k, (((1,), (1,)), ((), ())),
                                preferred_element_type=jnp.float32) * scale
        s = s + amask
        m = jnp.max(s, axis=-1, keepdims=True)
        e = jnp.exp(s - m)
        p = e * pl.reciprocal(jnp.sum(e, axis=-1, keepdims=True), approx=True)
        ctxs.append(jnp.dot(p, v, preferred_element_type=jnp.float32))   # (S, Dh)
    ctx = jnp.concatenate(ctxs, axis=-1)                                  # (S, nH*Dh)

    # --- folded output projection over heads: one matmul ---
    attn_out = jnp.dot(ctx, wo_ref[0], preferred_element_type=jnp.float32) + bo_ref[0]

    # --- residual + LayerNorm, FFN, residual + LayerNorm ---
    x1 = _layernorm(attn_out + x, g1_ref[0], b1_ref[0])
    inter = _gelu(jnp.dot(x1, wi_ref[0], preferred_element_type=jnp.float32) + bi_ref[0])
    ffn = jnp.dot(inter, wf_ref[0], preferred_element_type=jnp.float32) + bf_ref[0]
    out_ref[...] = _layernorm(ffn + x1, g2_ref[0], b2_ref[0])


def bert_encoder(params, emb, add_mask):
    BS, H = emb.shape
    B, _, S = add_mask.shape
    kernel = functools.partial(_encoder_kernel, nH=HEADS)
    e2 = lambda b, l: (b, 0)      # per-batch activation block (rows b*S..(b+1)*S)
    c2 = lambda b, l: (0, 0)      # shared 2-D params (embedding LN)
    m3 = lambda b, l: (b, 0, 0)   # per-batch mask
    p3 = lambda b, l: (l, 0, 0)   # per-layer weight stacks
    return pl.pallas_call(
        kernel,
        out_shape=jax.ShapeDtypeStruct((BS, H), jnp.float32),
        grid=(B, LAYERS),
        in_specs=[
            pl.BlockSpec((S, H), e2),                  # summed embeddings
            pl.BlockSpec((1, 1, S), m3),               # additive attention mask
            pl.BlockSpec((1, H), c2),                  # embedding LN gamma
            pl.BlockSpec((1, H), c2),                  # embedding LN beta
            pl.BlockSpec((1, H, 3 * H), p3),           # fused QKV weight (lane-dense)
            pl.BlockSpec((1, 1, 3 * H), p3),           # fused QKV bias
            pl.BlockSpec((1, H, H), p3),               # output projection (nH*Dh, H)
            pl.BlockSpec((1, 1, H), p3),               # output projection bias
            pl.BlockSpec((1, 1, H), p3),               # LN1 gamma
            pl.BlockSpec((1, 1, H), p3),               # LN1 beta
            pl.BlockSpec((1, H, INTER), p3),           # FFN up weight
            pl.BlockSpec((1, 1, INTER), p3),           # FFN up bias
            pl.BlockSpec((1, INTER, H), p3),           # FFN down weight
            pl.BlockSpec((1, 1, H), p3),               # FFN down bias
            pl.BlockSpec((1, 1, H), p3),               # LN2 gamma
            pl.BlockSpec((1, 1, H), p3),               # LN2 beta
        ],
        out_specs=pl.BlockSpec((S, H), e2),
        compiler_params=pltpu.CompilerParams(
            dimension_semantics=("parallel", "arbitrary"),
            vmem_limit_bytes=32 * 1024 * 1024),
    )(emb, add_mask, params["emb_ln_g"], params["emb_ln_b"],
      params["wqkv"], params["bqkv"], params["wo"], params["bo"],
      params["ln1_g"], params["ln1_b"], params["wi"], params["bi"],
      params["wf"], params["bf"], params["ln2_g"], params["ln2_b"])


# ========== fused kernel 2: gather + MLM head (dense+GELU, LayerNorm, tied decoder) ==========
def _mlm_head_kernel(rows_ref, h_ref, w_ref, b_ref, g_ref, beta_ref, emb_ref, db_ref,
                     o_ref, *, M):
    # gather the M question-position rows from the (B*S, H) encoder output (indices in SMEM)
    rows = [h_ref[pl.ds(rows_ref[i], 1), :] for i in range(M)]
    t = jnp.concatenate(rows, axis=0)                                     # (M, H)
    t = jnp.dot(t, w_ref[...], preferred_element_type=jnp.float32) + b_ref[...]
    t = _gelu(t)
    t = _layernorm(t, g_ref[...], beta_ref[...])
    # tied decoder: contract against embedding rows (transposed RHS in-kernel,
    # no HBM materialization of word_emb.T)
    logits = jax.lax.dot_general(
        t, emb_ref[...], (((1,), (1,)), ((), ())),
        preferred_element_type=jnp.float32) + db_ref[...]
    o_ref[...] = logits.astype(o_ref.dtype)


def mlm_head(params, hidden, rows):
    M = rows.shape[0]
    V = params["word_emb"].shape[0]
    kernel = functools.partial(_mlm_head_kernel, M=M)
    vmem = pl.BlockSpec(memory_space=pltpu.MemorySpace.VMEM)
    smem = pl.BlockSpec(memory_space=pltpu.MemorySpace.SMEM)
    return pl.pallas_call(
        kernel,
        out_shape=jax.ShapeDtypeStruct((M, V), jnp.float32),
        in_specs=[smem, vmem, vmem, vmem, vmem, vmem, vmem, vmem],
        out_specs=vmem,
    )(rows, hidden, params["mlm_dense_w"], params["mlm_dense_b"],
      params["mlm_ln_g"], params["mlm_ln_b"],
      params["word_emb"], params["decoder_b"])


# ---------------- parameter init (deterministic, synthetic) ----------------
def init_params(key):
    std = 0.02
    keys = iter(jax.random.split(key, 32))

    def nrm(shape):
        return std * jax.random.normal(next(keys), shape, dtype=jnp.float32)

    zeros = lambda shape: jnp.zeros(shape, jnp.float32)
    ones = lambda shape: jnp.ones(shape, jnp.float32)

    return {
        "word_emb": nrm((VOCAB, HIDDEN)),
        "pos_emb": nrm((MAX_POS, HIDDEN)),
        "tok_emb": nrm((2, HIDDEN)),
        "emb_ln_g": ones((1, HIDDEN)),
        "emb_ln_b": zeros((1, HIDDEN)),
        # per-layer encoder weights stacked on a leading LAYERS axis, lane-dense:
        #   wqkv: columns [0:H)=Q heads, [H:2H)=K heads, [2H:3H)=V heads
        #   wo:   rows are the concatenated per-head context dims (nH*Dh = H)
        "wqkv": nrm((LAYERS, HIDDEN, 3 * HIDDEN)),
        "bqkv": zeros((LAYERS, 1, 3 * HIDDEN)),
        "wo": nrm((LAYERS, HIDDEN, HIDDEN)),
        "bo": zeros((LAYERS, 1, HIDDEN)),
        "ln1_g": ones((LAYERS, 1, HIDDEN)),
        "ln1_b": zeros((LAYERS, 1, HIDDEN)),
        "wi": nrm((LAYERS, HIDDEN, INTER)),
        "bi": zeros((LAYERS, 1, INTER)),
        "wf": nrm((LAYERS, INTER, HIDDEN)),
        "bf": zeros((LAYERS, 1, HIDDEN)),
        "ln2_g": ones((LAYERS, 1, HIDDEN)),
        "ln2_b": zeros((LAYERS, 1, HIDDEN)),
        "mlm_dense_w": nrm((HIDDEN, HIDDEN)),
        "mlm_dense_b": zeros((1, HIDDEN)),
        "mlm_ln_g": ones((1, HIDDEN)),
        "mlm_ln_b": zeros((1, HIDDEN)),
        "decoder_b": zeros((1, VOCAB)),
    }


# ---------------- forward pass ----------------
def bert_for_fit(params, articles, articles_mask, ops, ops_mask,
                 question_pos, mask, target):
    B, S = articles.shape
    H = HIDDEN
    opnum = ops.shape[1]

    # --- BertEmbeddings: table lookups are glue; sum + LayerNorm fused into encoder ---
    pos_ids = jnp.arange(S, dtype=jnp.int32)
    words = jnp.take(params["word_emb"], articles, axis=0)           # (B, S, H)
    poss = jnp.take(params["pos_emb"], pos_ids, axis=0)[None, :, :]  # (1, S, H)
    toks = jnp.take(params["tok_emb"], jnp.zeros_like(articles), axis=0)
    emb = (words + poss + toks).reshape(B * S, H)

    # extended attention mask: (1 - m) * -10000, kept as (B, 1, S)
    add_mask = ((1.0 - articles_mask.astype(jnp.float32)) * -10000.0)[:, None, :]

    # --- BertEncoder (+ embeddings LayerNorm), one fused pallas_call ---
    x = bert_encoder(params, emb, add_mask)                          # (B*S, H)
    # TODO(synk): BertPooler output is unused by the downstream head and is skipped.

    # flat row indices of the question positions; the gather happens inside kernel 2
    rows = (jnp.arange(B, dtype=jnp.int32)[:, None] * S + question_pos).reshape(-1)

    # --- MLM head: gather + dense+gelu + LayerNorm + tied decoder, one pallas_call ---
    logits = mlm_head(params, x, rows)                               # (B*opnum, V)

    logits = logits.reshape(B, opnum, 1, VOCAB)
    logits4 = jnp.broadcast_to(logits, (B, opnum, NOPT, VOCAB))
    opt = jnp.take_along_axis(logits4, ops, axis=3)                  # (B, opnum, 4, OPLEN)
    opt = opt * ops_mask
    denom = jnp.maximum(ops_mask.sum(-1), 1e-9)
    scores = (opt.sum(-1) / denom).reshape(-1, NOPT)                 # (B*opnum, 4)
    tgt = target.reshape(-1)

    # tiny cross-entropy (reduction='none') + accuracy, done as glue
    lse = jax.scipy.special.logsumexp(scores, axis=-1)
    picked = jnp.take_along_axis(scores, tgt[:, None], axis=1)[:, 0]
    loss = (lse - picked).reshape(B, opnum)
    acc = (jnp.argmax(scores, axis=-1) == tgt).astype(jnp.float32).reshape(B, opnum)

    loss = loss * mask
    acc = (acc * mask).sum()
    loss = loss.sum() / mask.sum()
    return loss, acc


# ---------------- run ----------------
if __name__ == "__main__":
    key = jax.random.PRNGKey(0)
    kp, k1, k2, k3, k4, k5 = jax.random.split(key, 6)
    params = init_params(kp)

    articles = jax.random.randint(k1, (BSZ, SEQ), 0, VOCAB, dtype=jnp.int32)
    articles_mask = jnp.ones((BSZ, SEQ), jnp.float32).at[1, SEQ - 3:].set(0.0)
    ops = jax.random.randint(k2, (BSZ, OPNUM, NOPT, OPLEN), 0, VOCAB, dtype=jnp.int32)
    ops_mask = jnp.ones((BSZ, OPNUM, NOPT, OPLEN), jnp.float32)
    ops_mask = ops_mask.at[..., OPLEN - 1].set(
        jax.random.bernoulli(k3, 0.5, (BSZ, OPNUM, NOPT)).astype(jnp.float32))
    question_pos = jax.random.randint(k4, (BSZ, OPNUM), 0, SEQ, dtype=jnp.int32)
    mask = jnp.ones((BSZ, OPNUM), jnp.float32).at[1, 1].set(0.0)
    target = jax.random.randint(k5, (BSZ, OPNUM), 0, NOPT, dtype=jnp.int32)

    loss, acc = jax.jit(bert_for_fit)(
        params, articles, articles_mask, ops, ops_mask, question_pos, mask, target)
    jax.block_until_ready((loss, acc))
    assert bool(jnp.isfinite(loss)) and bool(jnp.isfinite(acc))
    print("KERNEL_OK")
</pallas_src>

<mosaic_0001>
module attributes {stable_mosaic.version = 11 : i64} {
  func.func @_mlm_head_kernel(%arg0: memref<4xi32, #tpu.memory_space<smem>>, %arg1: memref<32x32xf32, #tpu.memory_space<vmem>>, %arg2: memref<32x32xf32, #tpu.memory_space<vmem>>, %arg3: memref<1x32xf32, #tpu.memory_space<vmem>>, %arg4: memref<1x32xf32, #tpu.memory_space<vmem>>, %arg5: memref<1x32xf32, #tpu.memory_space<vmem>>, %arg6: memref<64x32xf32, #tpu.memory_space<vmem>>, %arg7: memref<1x64xf32, #tpu.memory_space<vmem>>, %arg8: memref<4x64xf32, #tpu.memory_space<vmem>>) attributes {dimension_semantics = [], scalar_prefetch = 0 : i64, scratch_operands = 0 : i64, tpu.core_type = #tpu.core_type<tc>} {
    %c0 = arith.constant 0 : index
    %0 = memref.load %arg0[%c0] : memref<4xi32, #tpu.memory_space<smem>>
    %1 = arith.index_cast %0 : i32 to index
    %c0_0 = arith.constant 0 : index
    %2 = vector.load %arg1[%1, %c0_0] : memref<32x32xf32, #tpu.memory_space<vmem>>, vector<1x32xf32>
    %c1 = arith.constant 1 : index
    %3 = memref.load %arg0[%c1] : memref<4xi32, #tpu.memory_space<smem>>
    %4 = arith.index_cast %3 : i32 to index
    %c0_1 = arith.constant 0 : index
    %5 = vector.load %arg1[%4, %c0_1] : memref<32x32xf32, #tpu.memory_space<vmem>>, vector<1x32xf32>
    %c2 = arith.constant 2 : index
    %6 = memref.load %arg0[%c2] : memref<4xi32, #tpu.memory_space<smem>>
    %7 = arith.index_cast %6 : i32 to index
    %c0_2 = arith.constant 0 : index
    %8 = vector.load %arg1[%7, %c0_2] : memref<32x32xf32, #tpu.memory_space<vmem>>, vector<1x32xf32>
    %c3 = arith.constant 3 : index
    %9 = memref.load %arg0[%c3] : memref<4xi32, #tpu.memory_space<smem>>
    %10 = arith.index_cast %9 : i32 to index
    %c0_3 = arith.constant 0 : index
    %11 = vector.load %arg1[%10, %c0_3] : memref<32x32xf32, #tpu.memory_space<vmem>>, vector<1x32xf32>
    %12 = tpu.concatenate %2, %5, %8, %11 in 0 : vector<1x32xf32>, vector<1x32xf32>, vector<1x32xf32>, vector<1x32xf32> -> vector<4x32xf32>
    %c0_4 = arith.constant 0 : index
    %c0_5 = arith.constant 0 : index
    %13 = vector.load %arg2[%c0_4, %c0_5] : memref<32x32xf32, #tpu.memory_space<vmem>>, vector<32x32xf32>
    %cst = arith.constant dense<0.000000e+00> : vector<4x32xf32>
    %14 = tpu.matmul %12, %13, %cst {dimension_numbers = #tpu.dot_dimension_numbers<[1], [0], [0], [1], [0, 0, 1, 1], [], []>} : vector<4x32xf32>, vector<32x32xf32>, vector<4x32xf32> -> vector<4x32xf32>
    %c0_6 = arith.constant 0 : index
    %c0_7 = arith.constant 0 : index
    %15 = vector.load %arg3[%c0_6, %c0_7] : memref<1x32xf32, #tpu.memory_space<vmem>>, vector<1x32xf32>
    %16 = vector.broadcast %15 : vector<1x32xf32> to vector<4x32xf32>
    %17 = arith.addf %14, %16 : vector<4x32xf32>
    %cst_8 = arith.constant 5.000000e-01 : f32
    %18 = vector.broadcast %cst_8 : f32 to vector<4x32xf32>
    %19 = arith.mulf %18, %17 : vector<4x32xf32>
    %cst_9 = arith.constant 4.471500e-02 : f32
    %20 = vector.broadcast %cst_9 : f32 to vector<4x32xf32>
    %21 = arith.mulf %20, %17 : vector<4x32xf32>
    %22 = arith.mulf %21, %17 : vector<4x32xf32>
    %23 = arith.mulf %22, %17 : vector<4x32xf32>
    %24 = arith.addf %17, %23 : vector<4x32xf32>
    %cst_10 = arith.constant 0.797884583 : f32
    %25 = vector.broadcast %cst_10 : f32 to vector<4x32xf32>
    %26 = arith.mulf %25, %24 : vector<4x32xf32>
    %27 = math.tanh %26 : vector<4x32xf32>
    %cst_11 = arith.constant 1.000000e+00 : f32
    %28 = vector.broadcast %cst_11 : f32 to vector<4x32xf32>
    %29 = arith.addf %28, %27 : vector<4x32xf32>
    %30 = arith.mulf %19, %29 : vector<4x32xf32>
    %c0_12 = arith.constant 0 : index
    %c0_13 = arith.constant 0 : index
    %31 = vector.load %arg4[%c0_12, %c0_13] : memref<1x32xf32, #tpu.memory_space<vmem>>, vector<1x32xf32>
    %c0_14 = arith.constant 0 : index
    %c0_15 = arith.constant 0 : index
    %32 = vector.load %arg5[%c0_14, %c0_15] : memref<1x32xf32, #tpu.memory_space<vmem>>, vector<1x32xf32>
    %cst_16 = arith.constant dense<0.000000e+00> : vector<4xf32>
    %33 = vector.multi_reduction <add>, %30, %cst_16 [1] : vector<4x32xf32> to vector<4xf32>
    %34 = vector.shape_cast %33 : vector<4xf32> to vector<4x1xf32>
    %cst_17 = arith.constant 3.200000e+01 : f32
    %35 = vector.broadcast %cst_17 : f32 to vector<4x1xf32>
    %36 = arith.divf %34, %35 : vector<4x1xf32>
    %37 = vector.broadcast %36 : vector<4x1xf32> to vector<4x32xf32>
    %38 = arith.subf %30, %37 : vector<4x32xf32>
    %39 = arith.mulf %38, %38 : vector<4x32xf32>
    %cst_18 = arith.constant dense<0.000000e+00> : vector<4xf32>
    %40 = vector.multi_reduction <add>, %39, %cst_18 [1] : vector<4x32xf32> to vector<4xf32>
    %41 = vector.shape_cast %40 : vector<4xf32> to vector<4x1xf32>
    %cst_19 = arith.constant 3.200000e+01 : f32
    %42 = vector.broadcast %cst_19 : f32 to vector<4x1xf32>
    %43 = arith.divf %41, %42 : vector<4x1xf32>
    %44 = vector.broadcast %36 : vector<4x1xf32> to vector<4x32xf32>
    %45 = arith.subf %30, %44 : vector<4x32xf32>
    %cst_20 = arith.constant 9.99999996E-13 : f32
    %46 = vector.broadcast %cst_20 : f32 to vector<4x1xf32>
    %47 = arith.addf %43, %46 : vector<4x1xf32>
    %48 = math.rsqrt %47 : vector<4x1xf32>
    %49 = vector.broadcast %48 : vector<4x1xf32> to vector<4x32xf32>
    %50 = arith.mulf %45, %49 : vector<4x32xf32>
    %51 = vector.broadcast %31 : vector<1x32xf32> to vector<4x32xf32>
    %52 = arith.mulf %50, %51 : vector<4x32xf32>
    %53 = vector.broadcast %32 : vector<1x32xf32> to vector<4x32xf32>
    %54 = arith.addf %52, %53 : vector<4x32xf32>
    %c0_21 = arith.constant 0 : index
    %c0_22 = arith.constant 0 : index
    %55 = vector.load %arg6[%c0_21, %c0_22] : memref<64x32xf32, #tpu.memory_space<vmem>>, vector<64x32xf32>
    %cst_23 = arith.constant dense<0.000000e+00> : vector<4x64xf32>
    %56 = tpu.matmul %54, %55, %cst_23 {dimension_numbers = #tpu.dot_dimension_numbers<[1], [1], [0], [0], [0, 0, 1, 0], [], []>} : vector<4x32xf32>, vector<64x32xf32>, vector<4x64xf32> -> vector<4x64xf32>
    %c0_24 = arith.constant 0 : index
    %c0_25 = arith.constant 0 : index
    %57 = vector.load %arg7[%c0_24, %c0_25] : memref<1x64xf32, #tpu.memory_space<vmem>>, vector<1x64xf32>
    %58 = vector.broadcast %57 : vector<1x64xf32> to vector<4x64xf32>
    %59 = arith.addf %56, %58 : vector<4x64xf32>
    %c0_26 = arith.constant 0 : index
    %c0_27 = arith.constant 0 : index
    %60 = vector.load %arg8[%c0_26, %c0_27] : memref<4x64xf32, #tpu.memory_space<vmem>>, vector<4x64xf32>
    tpu.vector_store %arg8[%c0_26, %c0_27], %59 {strides = array<i32>} : memref<4x64xf32, #tpu.memory_space<vmem>>, vector<4x64xf32>,
    return
  }
}

module attributes {stable_mosaic.version = 11 : i64} {
  func.func @_encoder_kernel(%arg0: i32, %arg1: i32, %arg2: memref<16x32xf32, #tpu.memory_space<vmem>>, %arg3: memref<1x1x16xf32, #tpu.memory_space<vmem>>, %arg4: memref<1x32xf32, #tpu.memory_space<vmem>>, %arg5: memref<1x32xf32, #tpu.memory_space<vmem>>, %arg6: memref<1x32x96xf32, #tpu.memory_space<vmem>>, %arg7: memref<1x1x96xf32, #tpu.memory_space<vmem>>, %arg8: memref<1x32x32xf32, #tpu.memory_space<vmem>>, %arg9: memref<1x1x32xf32, #tpu.memory_space<vmem>>, %arg10: memref<1x1x32xf32, #tpu.memory_space<vmem>>, %arg11: memref<1x1x32xf32, #tpu.memory_space<vmem>>, %arg12: memref<1x32x64xf32, #tpu.memory_space<vmem>>, %arg13: memref<1x1x64xf32, #tpu.memory_space<vmem>>, %arg14: memref<1x64x32xf32, #tpu.memory_space<vmem>>, %arg15: memref<1x1x32xf32, #tpu.memory_space<vmem>>, %arg16: memref<1x1x32xf32, #tpu.memory_space<vmem>>, %arg17: memref<1x1x32xf32, #tpu.memory_space<vmem>>, %arg18: memref<16x32xf32, #tpu.memory_space<vmem>>) attributes {dimension_semantics = [#tpu.dimension_semantics<parallel>, #tpu.dimension_semantics<arbitrary>], iteration_bounds = array<i64: 2, 2>, scalar_prefetch = 0 : i64, scratch_operands = 0 : i64, tpu.core_type = #tpu.core_type<tc>, window_params = [{transform_indices = @transform_0, window_bounds = array<i64: 16, 32>}, {transform_indices = @transform_1, window_bounds = array<i64: 1, 1, 16>}, {pipeline_mode = #tpu.pipeline_mode<synchronous>, transform_indices = @transform_2, window_bounds = array<i64: 1, 32>}, {pipeline_mode = #tpu.pipeline_mode<synchronous>, transform_indices = @transform_3, window_bounds = array<i64: 1, 32>}, {transform_indices = @transform_4, window_bounds = array<i64: 1, 32, 96>}, {transform_indices = @transform_5, window_bounds = array<i64: 1, 1, 96>}, {transform_indices = @transform_6, window_bounds = array<i64: 1, 32, 32>}, {transform_indices = @transform_7, window_bounds = array<i64: 1, 1, 32>}, {transform_indices = @transform_8, window_bounds = array<i64: 1, 1, 32>}, {transform_indices = @transform_9, window_bounds = array<i64: 1, 1, 32>}, {transform_indices = @transform_10, window_bounds = array<i64: 1, 32, 64>}, {transform_indices = @transform_11, window_bounds = array<i64: 1, 1, 64>}, {transform_indices = @transform_12, window_bounds = array<i64: 1, 64, 32>}, {transform_indices = @transform_13, window_bounds = array<i64: 1, 1, 32>}, {transform_indices = @transform_14, window_bounds = array<i64: 1, 1, 32>}, {transform_indices = @transform_15, window_bounds = array<i64: 1, 1, 32>}, {transform_indices = @transform_16, window_bounds = array<i64: 16, 32>}]} {
    %c0_i32 = arith.constant 0 : i32
    %0 = arith.cmpi eq, %arg1, %c0_i32 : i32
    %1 = arith.extui %0 : i1 to i32
    %c0_i32_0 = arith.constant 0 : i32
    %2 = arith.cmpi ne, %1, %c0_i32_0 : i32
    scf.if %2 {
      %c0_70 = arith.constant 0 : index
      %c0_71 = arith.constant 0 : index
      %141 = vector.load %arg2[%c0_70, %c0_71] : memref<16x32xf32, #tpu.memory_space<vmem>>, vector<16x32xf32>
      %c0_72 = arith.constant 0 : index
      %c0_73 = arith.constant 0 : index
      %142 = vector.load %arg4[%c0_72, %c0_73] : memref<1x32xf32, #tpu.memory_space<vmem>>, vector<1x32xf32>
      %c0_74 = arith.constant 0 : index
      %c0_75 = arith.constant 0 : index
      %143 = vector.load %arg5[%c0_74, %c0_75] : memref<1x32xf32, #tpu.memory_space<vmem>>, vector<1x32xf32>
      %cst_76 = arith.constant dense<0.000000e+00> : vector<16xf32>
      %144 = vector.multi_reduction <add>, %141, %cst_76 [1] : vector<16x32xf32> to vector<16xf32>
      %145 = vector.shape_cast %144 : vector<16xf32> to vector<16x1xf32>
      %cst_77 = arith.constant 3.200000e+01 : f32
      %146 = vector.broadcast %cst_77 : f32 to vector<16x1xf32>
      %147 = arith.divf %145, %146 : vector<16x1xf32>
      %148 = vector.broadcast %147 : vector<16x1xf32> to vector<16x32xf32>
      %149 = arith.subf %141, %148 : vector<16x32xf32>
      %150 = arith.mulf %149, %149 : vector<16x32xf32>
      %cst_78 = arith.constant dense<0.000000e+00> : vector<16xf32>
      %151 = vector.multi_reduction <add>, %150, %cst_78 [1] : vector<16x32xf32> to vector<16xf32>
      %152 = vector.shape_cast %151 : vector<16xf32> to vector<16x1xf32>
      %cst_79 = arith.constant 3.200000e+01 : f32
      %153 = vector.broadcast %cst_79 : f32 to vector<16x1xf32>
      %154 = arith.divf %152, %153 : vector<16x1xf32>
      %155 = vector.broadcast %147 : vector<16x1xf32> to vector<16x32xf32>
      %156 = arith.subf %141, %155 : vector<16x32xf32>
      %cst_80 = arith.constant 9.99999996E-13 : f32
      %157 = vector.broadcast %cst_80 : f32 to vector<16x1xf32>
      %158 = arith.addf %154, %157 : vector<16x1xf32>
      %159 = math.rsqrt %158 : vector<16x1xf32>
      %160 = vector.broadcast %159 : vector<16x1xf32> to vector<16x32xf32>
      %161 = arith.mulf %156, %160 : vector<16x32xf32>
      %162 = vector.broadcast %142 : vector<1x32xf32> to vector<16x32xf32>
      %163 = arith.mulf %161, %162 : vector<16x32xf32>
      %164 = vector.broadcast %143 : vector<1x32xf32> to vector<16x32xf32>
      %165 = arith.addf %163, %164 : vector<16x32xf32>
      %c0_81 = arith.constant 0 : index
      %c0_82 = arith.constant 0 : index
      %166 = vector.load %arg18[%c0_81, %c0_82] : memref<16x32xf32, #tpu.memory_space<vmem>>, vector<16x32xf32>
      tpu.vector_store %arg18[%c0_81, %c0_82], %165 {strides = array<i32>} : memref<16x32xf32, #tpu.memory_space<vmem>>, vector<16x32xf32>,
    } else {
    }
    %c0 = arith.constant 0 : index
    %c0_1 = arith.constant 0 : index
    %3 = vector.load %arg18[%c0, %c0_1] : memref<16x32xf32, #tpu.memory_space<vmem>>, vector<16x32xf32>
    %c0_2 = arith.constant 0 : index
    %c0_3 = arith.constant 0 : index
    %c0_4 = arith.constant 0 : index
    %4 = vector.load %arg6[%c0_2, %c0_3, %c0_4] : memref<1x32x96xf32, #tpu.memory_space<vmem>>, vector<1x32x96xf32>
    %5 = vector.shape_cast %4 : vector<1x32x96xf32> to vector<32x96xf32>
    %cst = arith.constant dense<0.000000e+00> : vector<16x96xf32>
    %6 = tpu.matmul %3, %5, %cst {dimension_numbers = #tpu.dot_dimension_numbers<[1], [0], [0], [1], [0, 0, 1, 1], [], []>} : vector<16x32xf32>, vector<32x96xf32>, vector<16x96xf32> -> vector<16x96xf32>
    %c0_5 = arith.constant 0 : index
    %c0_6 = arith.constant 0 : index
    %c0_7 = arith.constant 0 : index
    %7 = vector.load %arg7[%c0_5, %c0_6, %c0_7] : memref<1x1x96xf32, #tpu.memory_space<vmem>>, vector<1x1x96xf32>
    %8 = vector.shape_cast %7 : vector<1x1x96xf32> to vector<1x96xf32>
    %9 = vector.broadcast %8 : vector<1x96xf32> to vector<16x96xf32>
    %10 = arith.addf %6, %9 : vector<16x96xf32>
    %c0_8 = arith.constant 0 : index
    %c0_9 = arith.constant 0 : index
    %c0_10 = arith.constant 0 : index
    %11 = vector.load %arg3[%c0_8, %c0_9, %c0_10] : memref<1x1x16xf32, #tpu.memory_space<vmem>>, vector<1x1x16xf32>
    %12 = vector.shape_cast %11 : vector<1x1x16xf32> to vector<1x16xf32>
    %13 = vector.extract_strided_slice %10 {offsets = [0, 0], sizes = [16, 16], strides = [1, 1]} : vector<16x96xf32> to vector<16x16xf32>
    %14 = vector.extract_strided_slice %10 {offsets = [0, 32], sizes = [16, 16], strides = [1, 1]} : vector<16x96xf32> to vector<16x16xf32>
    %15 = vector.extract_strided_slice %10 {offsets = [0, 64], sizes = [16, 16], strides = [1, 1]} : vector<16x96xf32> to vector<16x16xf32>
    %cst_11 = arith.constant dense<0.000000e+00> : vector<16x16xf32>
    %16 = tpu.matmul %13, %14, %cst_11 {dimension_numbers = #tpu.dot_dimension_numbers<[1], [1], [0], [0], [0, 0, 1, 0], [], []>} : vector<16x16xf32>, vector<16x16xf32>, vector<16x16xf32> -> vector<16x16xf32>
    %cst_12 = arith.constant 2.500000e-01 : f32
    %17 = vector.broadcast %cst_12 : f32 to vector<16x16xf32>
    %18 = arith.mulf %16, %17 : vector<16x16xf32>
    %19 = vector.broadcast %12 : vector<1x16xf32> to vector<16x16xf32>
    %20 = arith.addf %18, %19 : vector<16x16xf32>
    %cst_13 = arith.constant dense<0xFF800000> : vector<16xf32>
    %21 = vector.multi_reduction <maximumf>, %20, %cst_13 [1] : vector<16x16xf32> to vector<16xf32>
    %22 = vector.shape_cast %21 : vector<16xf32> to vector<16x1xf32>
    %23 = vector.broadcast %22 : vector<16x1xf32> to vector<16x16xf32>
    %24 = arith.subf %20, %23 : vector<16x16xf32>
    %25 = math.exp %24 : vector<16x16xf32>
    %cst_14 = arith.constant dense<0.000000e+00> : vector<16xf32>
    %26 = vector.multi_reduction <add>, %25, %cst_14 [1] : vector<16x16xf32> to vector<16xf32>
    %27 = vector.shape_cast %26 : vector<16xf32> to vector<16x1xf32>
    %28 = tpu.reciprocal %27 {approx = true} : vector<16x1xf32> -> vector<16x1xf32>
    %29 = vector.broadcast %28 : vector<16x1xf32> to vector<16x16xf32>
    %30 = arith.mulf %25, %29 : vector<16x16xf32>
    %cst_15 = arith.constant dense<0.000000e+00> : vector<16x16xf32>
    %31 = tpu.matmul %30, %15, %cst_15 {dimension_numbers = #tpu.dot_dimension_numbers<[1], [0], [0], [1], [0, 0, 1, 1], [], []>} : vector<16x16xf32>, vector<16x16xf32>, vector<16x16xf32> -> vector<16x16xf32>
    %32 = vector.extract_strided_slice %10 {offsets = [0, 16], sizes = [16, 16], strides = [1, 1]} : vector<16x96xf32> to vector<16x16xf32>
    %33 = vector.extract_strided_slice %10 {offsets = [0, 48], sizes = [16, 16], strides = [1, 1]} : vector<16x96xf32> to vector<16x16xf32>
    %34 = vector.extract_strided_slice %10 {offsets = [0, 80], sizes = [16, 16], strides = [1, 1]} : vector<16x96xf32> to vector<16x16xf32>
    %cst_16 = arith.constant dense<0.000000e+00> : vector<16x16xf32>
    %35 = tpu.matmul %32, %33, %cst_16 {dimension_numbers = #tpu.dot_dimension_numbers<[1], [1], [0], [0], [0, 0, 1, 0], [], []>} : vector<16x16xf32>, vector<16x16xf32>, vector<16x16xf32> -> vector<16x16xf32>
    %cst_17 = arith.constant 2.500000e-01 : f32
    %36 = vector.broadcast %cst_17 : f32 to vector<16x16xf32>
    %37 = arith.mulf %35, %36 : vector<16x16xf32>
    %38 = vector.broadcast %12 : vector<1x16xf32> to vector<16x16xf32>
    %39 = arith.addf %37, %38 : vector<16x16xf32>
    %cst_18 = arith.constant dense<0xFF800000> : vector<16xf32>
    %40 = vector.multi_reduction <maximumf>, %39, %cst_18 [1] : vector<16x16xf32> to vector<16xf32>
    %41 = vector.shape_cast %40 : vector<16xf32> to vector<16x1xf32>
    %42 = vector.broadcast %41 : vector<16x1xf32> to vector<16x16xf32>
    %43 = arith.subf %39, %42 : vector<16x16xf32>
    %44 = math.exp %43 : vector<16x16xf32>
    %cst_19 = arith.constant dense<0.000000e+00> : vector<16xf32>
    %45 = vector.multi_reduction <add>, %44, %cst_19 [1] : vector<16x16xf32> to vector<16xf32>
    %46 = vector.shape_cast %45 : vector<16xf32> to vector<16x1xf32>
    %47 = tpu.reciprocal %46 {approx = true} : vector<16x1xf32> -> vector<16x1xf32>
    %48 = vector.broadcast %47 : vector<16x1xf32> to vector<16x16xf32>
    %49 = arith.mulf %44, %48 : vector<16x16xf32>
    %cst_20 = arith.constant dense<0.000000e+00> : vector<16x16xf32>
    %50 = tpu.matmul %49, %34, %cst_20 {dimension_numbers = #tpu.dot_dimension_numbers<[1], [0], [0], [1], [0, 0, 1, 1], [], []>} : vector<16x16xf32>, vector<16x16xf32>, vector<16x16xf32> -> vector<16x16xf32>
    %51 = tpu.concatenate %31, %50 in 1 : vector<16x16xf32>, vector<16x16xf32> -> vector<16x32xf32>
    %c0_21 = arith.constant 0 : index
    %c0_22 = arith.constant 0 : index
    %c0_23 = arith.constant 0 : index
    %52 = vector.load %arg8[%c0_21, %c0_22, %c0_23] : memref<1x32x32xf32, #tpu.memory_space<vmem>>, vector<1x32x32xf32>
    %53 = vector.shape_cast %52 : vector<1x32x32xf32> to vector<32x32xf32>
    %cst_24 = arith.constant dense<0.000000e+00> : vector<16x32xf32>
    %54 = tpu.matmul %51, %53, %cst_24 {dimension_numbers = #tpu.dot_dimension_numbers<[1], [0], [0], [1], [0, 0, 1, 1], [], []>} : vector<16x32xf32>, vector<32x32xf32>, vector<16x32xf32> -> vector<16x32xf32>
    %c0_25 = arith.constant 0 : index
    %c0_26 = arith.constant 0 : index
    %c0_27 = arith.constant 0 : index
    %55 = vector.load %arg9[%c0_25, %c0_26, %c0_27] : memref<1x1x32xf32, #tpu.memory_space<vmem>>, vector<1x1x32xf32>
    %56 = vector.shape_cast %55 : vector<1x1x32xf32> to vector<1x32xf32>
    %57 = vector.broadcast %56 : vector<1x32xf32> to vector<16x32xf32>
    %58 = arith.addf %54, %57 : vector<16x32xf32>
    %59 = arith.addf %58, %3 : vector<16x32xf32>
    %c0_28 = arith.constant 0 : index
    %c0_29 = arith.constant 0 : index
    %c0_30 = arith.constant 0 : index
    %60 = vector.load %arg10[%c0_28, %c0_29, %c0_30] : memref<1x1x32xf32, #tpu.memory_space<vmem>>, vector<1x1x32xf32>
    %61 = vector.shape_cast %60 : vector<1x1x32xf32> to vector<1x32xf32>
    %c0_31 = arith.constant 0 : index
    %c0_32 = arith.constant 0 : index
    %c0_33 = arith.constant 0 : index
    %62 = vector.load %arg11[%c0_31, %c0_32, %c0_33] : memref<1x1x32xf32, #tpu.memory_space<vmem>>, vector<1x1x32xf32>
    %63 = vector.shape_cast %62 : vector<1x1x32xf32> to vector<1x32xf32>
    %cst_34 = arith.constant dense<0.000000e+00> : vector<16xf32>
    %64 = vector.multi_reduction <add>, %59, %cst_34 [1] : vector<16x32xf32> to vector<16xf32>
    %65 = vector.shape_cast %64 : vector<16xf32> to vector<16x1xf32>
    %cst_35 = arith.constant 3.200000e+01 : f32
    %66 = vector.broadcast %cst_35 : f32 to vector<16x1xf32>
    %67 = arith.divf %65, %66 : vector<16x1xf32>
    %68 = vector.broadcast %67 : vector<16x1xf32> to vector<16x32xf32>
    %69 = arith.subf %59, %68 : vector<16x32xf32>
    %70 = arith.mulf %69, %69 : vector<16x32xf32>
    %cst_36 = arith.constant dense<0.000000e+00> : vector<16xf32>
    %71 = vector.multi_reduction <add>, %70, %cst_36 [1] : vector<16x32xf32> to vector<16xf32>
    %72 = vector.shape_cast %71 : vector<16xf32> to vector<16x1xf32>
    %cst_37 = arith.constant 3.200000e+01 : f32
    %73 = vector.broadcast %cst_37 : f32 to vector<16x1xf32>
    %74 = arith.divf %72, %73 : vector<16x1xf32>
    %75 = vector.broadcast %67 : vector<16x1xf32> to vector<16x32xf32>
    %76 = arith.subf %59, %75 : vector<16x32xf32>
    %cst_38 = arith.constant 9.99999996E-13 : f32
    %77 = vector.broadcast %cst_38 : f32 to vector<16x1xf32>
    %78 = arith.addf %74, %77 : vector<16x1xf32>
    %79 = math.rsqrt %78 : vector<16x1xf32>
    %80 = vector.broadcast %79 : vector<16x1xf32> to vector<16x32xf32>
    %81 = arith.mulf %76, %80 : vector<16x32xf32>
    %82 = vector.broadcast %61 : vector<1x32xf32> to vector<16x32xf32>
    %83 = arith.mulf %81, %82 : vector<16x32xf32>
    %84 = vector.broadcast %63 : vector<1x32xf32> to vector<16x32xf32>
    %85 = arith.addf %83, %84 : vector<16x32xf32>
    %c0_39 = arith.constant 0 : index
    %c0_40 = arith.constant 0 : index
    %c0_41 = arith.constant 0 : index
    %86 = vector.load %arg12[%c0_39, %c0_40, %c0_41] : memref<1x32x64xf32, #tpu.memory_space<vmem>>, vector<1x32x64xf32>
    %87 = vector.shape_cast %86 : vector<1x32x64xf32> to vector<32x64xf32>
    %cst_42 = arith.constant dense<0.000000e+00> : vector<16x64xf32>
    %88 = tpu.matmul %85, %87, %cst_42 {dimension_numbers = #tpu.dot_dimension_numbers<[1], [0], [0], [1], [0, 0, 1, 1], [], []>} : vector<16x32xf32>, vector<32x64xf32>, vector<16x64xf32> -> vector<16x64xf32>
    %c0_43 = arith.constant 0 : index
    %c0_44 = arith.constant 0 : index
    %c0_45 = arith.constant 0 : index
    %89 = vector.load %arg13[%c0_43, %c0_44, %c0_45] : memref<1x1x64xf32, #tpu.memory_space<vmem>>, vector<1x1x64xf32>
    %90 = vector.shape_cast %89 : vector<1x1x64xf32> to vector<1x64xf32>
    %91 = vector.broadcast %90 : vector<1x64xf32> to vector<16x64xf32>
    %92 = arith.addf %88, %91 : vector<16x64xf32>
    %cst_46 = arith.constant 5.000000e-01 : f32
    %93 = vector.broadcast %cst_46 : f32 to vector<16x64xf32>
    %94 = arith.mulf %93, %92 : vector<16x64xf32>
    %cst_47 = arith.constant 4.471500e-02 : f32
    %95 = vector.broadcast %cst_47 : f32 to vector<16x64xf32>
    %96 = arith.mulf %95, %92 : vector<16x64xf32>
    %97 = arith.mulf %96, %92 : vector<16x64xf32>
    %98 = arith.mulf %97, %92 : vector<16x64xf32>
    %99 = arith.addf %92, %98 : vector<16x64xf32>
    %cst_48 = arith.constant 0.797884583 : f32
    %100 = vector.broadcast %cst_48 : f32 to vector<16x64xf32>
    %101 = arith.mulf %100, %99 : vector<16x64xf32>
    %102 = math.tanh %101 : vector<16x64xf32>
    %cst_49 = arith.constant 1.000000e+00 : f32
    %103 = vector.broadcast %cst_49 : f32 to vector<16x64xf32>
    %104 = arith.addf %103, %102 : vector<16x64xf32>
    %105 = arith.mulf %94, %104 : vector<16x64xf32>
    %c0_50 = arith.constant 0 : index
    %c0_51 = arith.constant 0 : index
    %c0_52 = arith.constant 0 : index
    %106 = vector.load %arg14[%c0_50, %c0_51, %c0_52] : memref<1x64x32xf32, #tpu.memory_space<vmem>>, vector<1x64x32xf32>
    %107 = vector.shape_cast %106 : vector<1x64x32xf32> to vector<64x32xf32>
    %cst_53 = arith.constant dense<0.000000e+00> : vector<16x32xf32>
    %108 = tpu.matmul %105, %107, %cst_53 {dimension_numbers = #tpu.dot_dimension_numbers<[1], [0], [0], [1], [0, 0, 1, 1], [], []>} : vector<16x64xf32>, vector<64x32xf32>, vector<16x32xf32> -> vector<16x32xf32>
    %c0_54 = arith.constant 0 : index
    %c0_55 = arith.constant 0 : index
    %c0_56 = arith.constant 0 : index
    %109 = vector.load %arg15[%c0_54, %c0_55, %c0_56] : memref<1x1x32xf32, #tpu.memory_space<vmem>>, vector<1x1x32xf32>
    %110 = vector.shape_cast %109 : vector<1x1x32xf32> to vector<1x32xf32>
    %111 = vector.broadcast %110 : vector<1x32xf32> to vector<16x32xf32>
    %112 = arith.addf %108, %111 : vector<16x32xf32>
    %113 = arith.addf %112, %85 : vector<16x32xf32>
    %c0_57 = arith.constant 0 : index
    %c0_58 = arith.constant 0 : index
    %c0_59 = arith.constant 0 : index
    %114 = vector.load %arg16[%c0_57, %c0_58, %c0_59] : memref<1x1x32xf32, #tpu.memory_space<vmem>>, vector<1x1x32xf32>
    %115 = vector.shape_cast %114 : vector<1x1x32xf32> to vector<1x32xf32>
    %c0_60 = arith.constant 0 : index
    %c0_61 = arith.constant 0 : index
    %c0_62 = arith.constant 0 : index
    %116 = vector.load %arg17[%c0_60, %c0_61, %c0_62] : memref<1x1x32xf32, #tpu.memory_space<vmem>>, vector<1x1x32xf32>
    %117 = vector.shape_cast %116 : vector<1x1x32xf32> to vector<1x32xf32>
    %cst_63 = arith.constant dense<0.000000e+00> : vector<16xf32>
    %118 = vector.multi_reduction <add>, %113, %cst_63 [1] : vector<16x32xf32> to vector<16xf32>
    %119 = vector.shape_cast %118 : vector<16xf32> to vector<16x1xf32>
    %cst_64 = arith.constant 3.200000e+01 : f32
    %120 = vector.broadcast %cst_64 : f32 to vector<16x1xf32>
    %121 = arith.divf %119, %120 : vector<16x1xf32>
    %122 = vector.broadcast %121 : vector<16x1xf32> to vector<16x32xf32>
    %123 = arith.subf %113, %122 : vector<16x32xf32>
    %124 = arith.mulf %123, %123 : vector<16x32xf32>
    %cst_65 = arith.constant dense<0.000000e+00> : vector<16xf32>
    %125 = vector.multi_reduction <add>, %124, %cst_65 [1] : vector<16x32xf32> to vector<16xf32>
    %126 = vector.shape_cast %125 : vector<16xf32> to vector<16x1xf32>
    %cst_66 = arith.constant 3.200000e+01 : f32
    %127 = vector.broadcast %cst_66 : f32 to vector<16x1xf32>
    %128 = arith.divf %126, %127 : vector<16x1xf32>
    %129 = vector.broadcast %121 : vector<16x1xf32> to vector<16x32xf32>
    %130 = arith.subf %113, %129 : vector<16x32xf32>
    %cst_67 = arith.constant 9.99999996E-13 : f32
    %131 = vector.broadcast %cst_67 : f32 to vector<16x1xf32>
    %132 = arith.addf %128, %131 : vector<16x1xf32>
    %133 = math.rsqrt %132 : vector<16x1xf32>
    %134 = vector.broadcast %133 : vector<16x1xf32> to vector<16x32xf32>
    %135 = arith.mulf %130, %134 : vector<16x32xf32>
    %136 = vector.broadcast %115 : vector<1x32xf32> to vector<16x32xf32>
    %137 = arith.mulf %135, %136 : vector<16x32xf32>
    %138 = vector.broadcast %117 : vector<1x32xf32> to vector<16x32xf32>
    %139 = arith.addf %137, %138 : vector<16x32xf32>
    %c0_68 = arith.constant 0 : index
    %c0_69 = arith.constant 0 : index
    %140 = vector.load %arg18[%c0_68, %c0_69] : memref<16x32xf32, #tpu.memory_space<vmem>>, vector<16x32xf32>
    tpu.vector_store %arg18[%c0_68, %c0_69], %139 {strides = array<i32>} : memref<16x32xf32, #tpu.memory_space<vmem>>, vector<16x32xf32>,
    return
  }
  func.func @transform_0(%arg0: i32, %arg1: i32) -> (i32, i32) {
    %c0_i32 = arith.constant 0 : i32
    %c0_i32_0 = arith.constant 0 : i32
    return %arg0, %c0_i32 : i32, i32
  }
  func.func @transform_1(%arg0: i32, %arg1: i32) -> (i32, i32, i32) {
    %c0_i32 = arith.constant 0 : i32
    %c0_i32_0 = arith.constant 0 : i32
    %c0_i32_1 = arith.constant 0 : i32
    return %arg0, %c0_i32, %c0_i32_0 : i32, i32, i32
  }
  func.func @transform_2(%arg0: i32, %arg1: i32) -> (i32, i32) {
    %c0_i32 = arith.constant 0 : i32
    %c0_i32_0 = arith.constant 0 : i32
    %c0_i32_1 = arith.constant 0 : i32
    return %c0_i32, %c0_i32_0 : i32, i32
  }
  func.func @transform_3(%arg0: i32, %arg1: i32) -> (i32, i32) {
    %c0_i32 = arith.constant 0 : i32
    %c0_i32_0 = arith.constant 0 : i32
    %c0_i32_1 = arith.constant 0 : i32
    return %c0_i32, %c0_i32_0 : i32, i32
  }
  func.func @transform_4(%arg0: i32, %arg1: i32) -> (i32, i32, i32) {
    %c0_i32 = arith.constant 0 : i32
    %c0_i32_0 = arith.constant 0 : i32
    %c0_i32_1 = arith.constant 0 : i32
    return %arg1, %c0_i32, %c0_i32_0 : i32, i32, i32
  }
  func.func @transform_5(%arg0: i32, %arg1: i32) -> (i32, i32, i32) {
    %c0_i32 = arith.constant 0 : i32
    %c0_i32_0 = arith.constant 0 : i32
    %c0_i32_1 = arith.constant 0 : i32
    return %arg1, %c0_i32, %c0_i32_0 : i32, i32, i32
  }
  func.func @transform_6(%arg0: i32, %arg1: i32) -> (i32, i32, i32) {
    %c0_i32 = arith.constant 0 : i32
    %c0_i32_0 = arith.constant 0 : i32
    %c0_i32_1 = arith.constant 0 : i32
    return %arg1, %c0_i32, %c0_i32_0 : i32, i32, i32
  }
  func.func @transform_7(%arg0: i32, %arg1: i32) -> (i32, i32, i32) {
    %c0_i32 = arith.constant 0 : i32
    %c0_i32_0 = arith.constant 0 : i32
    %c0_i32_1 = arith.constant 0 : i32
    return %arg1, %c0_i32, %c0_i32_0 : i32, i32, i32
  }
  func.func @transform_8(%arg0: i32, %arg1: i32) -> (i32, i32, i32) {
    %c0_i32 = arith.constant 0 : i32
    %c0_i32_0 = arith.constant 0 : i32
    %c0_i32_1 = arith.constant 0 : i32
    return %arg1, %c0_i32, %c0_i32_0 : i32, i32, i32
  }
  func.func @transform_9(%arg0: i32, %arg1: i32) -> (i32, i32, i32) {
    %c0_i32 = arith.constant 0 : i32
    %c0_i32_0 = arith.constant 0 : i32
    %c0_i32_1 = arith.constant 0 : i32
    return %arg1, %c0_i32, %c0_i32_0 : i32, i32, i32
  }
  func.func @transform_10(%arg0: i32, %arg1: i32) -> (i32, i32, i32) {
    %c0_i32 = arith.constant 0 : i32
    %c0_i32_0 = arith.constant 0 : i32
    %c0_i32_1 = arith.constant 0 : i32
    return %arg1, %c0_i32, %c0_i32_0 : i32, i32, i32
  }
  func.func @transform_11(%arg0: i32, %arg1: i32) -> (i32, i32, i32) {
    %c0_i32 = arith.constant 0 : i32
    %c0_i32_0 = arith.constant 0 : i32
    %c0_i32_1 = arith.constant 0 : i32
    return %arg1, %c0_i32, %c0_i32_0 : i32, i32, i32
  }
  func.func @transform_12(%arg0: i32, %arg1: i32) -> (i32, i32, i32) {
    %c0_i32 = arith.constant 0 : i32
    %c0_i32_0 = arith.constant 0 : i32
    %c0_i32_1 = arith.constant 0 : i32
    return %arg1, %c0_i32, %c0_i32_0 : i32, i32, i32
  }
  func.func @transform_13(%arg0: i32, %arg1: i32) -> (i32, i32, i32) {
    %c0_i32 = arith.constant 0 : i32
    %c0_i32_0 = arith.constant 0 : i32
    %c0_i32_1 = arith.constant 0 : i32
    return %arg1, %c0_i32, %c0_i32_0 : i32, i32, i32
  }
  func.func @transform_14(%arg0: i32, %arg1: i32) -> (i32, i32, i32) {
    %c0_i32 = arith.constant 0 : i32
    %c0_i32_0 = arith.constant 0 : i32
    %c0_i32_1 = arith.constant 0 : i32
    return %arg1, %c0_i32, %c0_i32_0 : i32, i32, i32
  }
  func.func @transform_15(%arg0: i32, %arg1: i32) -> (i32, i32, i32) {
    %c0_i32 = arith.constant 0 : i32
    %c0_i32_0 = arith.constant 0 : i32
    %c0_i32_1 = arith.constant 0 : i32
    return %arg1, %c0_i32, %c0_i32_0 : i32, i32, i32
  }
  func.func @transform_16(%arg0: i32, %arg1: i32) -> (i32, i32) {
    %c0_i32 = arith.constant 0 : i32
    %c0_i32_0 = arith.constant 0 : i32
    return %arg0, %c0_i32 : i32, i32
  }
}

</mosaic_0001>

<llo_original>
// kernel: bert_for_fit.3
$region0: #{bert_for_fit.3}
  #allocation0 [shape = 'u32[]', space=smem, size = 0x4, offset = 0x4, fixed_abs, tag = 'smem constant byte address 0x4 - core index']
  #allocation1 [shape = 'u32[72,128]{1,0:T(1,128)}', space=vmem, size = 0x9000, scoped, tag = 'internal scratch']
  %s0 = inlined_call_operand.vmem [shape: s32[4], index: 0, kind: input, shape index: {}]
  %s1 = inlined_call_operand.vmem [shape: f32[32,32], index: 1, kind: input, shape index: {}]
  %s2 = inlined_call_operand.vmem [shape: f32[32,32], index: 2, kind: input, shape index: {}]
  %s3 = inlined_call_operand.vmem [shape: f32[1,32], index: 3, kind: input, shape index: {}]
  %s4 = inlined_call_operand.vmem [shape: f32[1,32], index: 4, kind: input, shape index: {}]
  %s5 = inlined_call_operand.vmem [shape: f32[1,32], index: 5, kind: input, shape index: {}]
  %s6 = inlined_call_operand.vmem [shape: f32[64,32], index: 6, kind: input, shape index: {}]
  %s7 = inlined_call_operand.vmem [shape: f32[1,64], index: 7, kind: input, shape index: {}]
  %s8 = inlined_call_operand.vmem [shape: f32[4,64], index: 8, kind: output, shape index: {}]
  %s9 = sld [smem:[#allocation0]]
  $region46: #{bert_for_fit.3} parent=0
    _
  %s11 = ssub.s32 1, %s9
  %s12 = scalar_select 0, %s11, %s9
  $region1: #{bert_for_fit.3} parent=0
    #allocation2 [shape = 'u8[512]{0}', space=smem, size = 0x200, scoped, tag = 'input window, operand 0, single buffered']
    #allocation3 [shape = 's32[1]{0}', space=sflag, size = 0x4, scoped, tag = 'scoped memory for bert_for_fit.3']
    %13 = vsyncpa [#allocation3], 0
    // Predicated region
    $region2: #{bert_for_fit.3} parent=1 // pred_check
      _
    $region3: #{bert_for_fit.3} parent=1 // pred_check_branch
      %15 = sbr.rel (0) target = $region5
    $region4: #{bert_for_fit.3} parent=1 // pred_region
      %17 = vsyncadd [#allocation3], 0
      %s19 = sshll.u32 %s0, 4
      %s20 = int_to_ptr.vmem [resolvable:$true] %s19
      %22 = dma.vmem_to_smem %s20, 16, [#allocation2], [#allocation3]
    $region5: #{bert_for_fit.3} parent=1 // pred_fallthru
      _
    // Predicated region
    $region6: #{bert_for_fit.3} parent=1 // pred_check
      _
    $region7: #{bert_for_fit.3} parent=1 // pred_check_branch
      %24 = sbr.rel (0) target = $region9
    $region8: #{bert_for_fit.3} parent=1 // pred_region
      _
    $region9: #{bert_for_fit.3} parent=1 // pred_fallthru
      _
    // Predicated region
    $region10: #{bert_for_fit.3} parent=1 // pred_check
      _
    $region11: #{bert_for_fit.3} parent=1 // pred_check_branch
      %26 = sbr.rel (0) target = $region13
    $region12: #{bert_for_fit.3} parent=1 // pred_region
      _
    $region13: #{bert_for_fit.3} parent=1 // pred_fallthru
      _
    // Predicated region
    $region14: #{bert_for_fit.3} parent=1 // pred_check
      _
    $region15: #{bert_for_fit.3} parent=1 // pred_check_branch
      %28 = sbr.rel (0) target = $region17
    $region16: #{bert_for_fit.3} parent=1 // pred_region
      _
    $region17: #{bert_for_fit.3} parent=1 // pred_fallthru
      _
    // Predicated region
    $region18: #{bert_for_fit.3} parent=1 // pred_check
      _
    $region19: #{bert_for_fit.3} parent=1 // pred_check_branch
      %30 = sbr.rel (0) target = $region21
    $region20: #{bert_for_fit.3} parent=1 // pred_region
      _
    $region21: #{bert_for_fit.3} parent=1 // pred_fallthru
      _
    // Predicated region
    $region22: #{bert_for_fit.3} parent=1 // pred_check
      _
    $region23: #{bert_for_fit.3} parent=1 // pred_check_branch
      %32 = sbr.rel (0) target = $region25
    $region24: #{bert_for_fit.3} parent=1 // pred_region
      _
    $region25: #{bert_for_fit.3} parent=1 // pred_fallthru
      _
    // Predicated region
    $region26: #{bert_for_fit.3} parent=1 // pred_check
      _
    $region27: #{bert_for_fit.3} parent=1 // pred_check_branch
      %34 = sbr.rel (0) target = $region29
    $region28: #{bert_for_fit.3} parent=1 // pred_region
      _
    $region29: #{bert_for_fit.3} parent=1 // pred_fallthru
      _
    // Predicated region
    $region30: #{bert_for_fit.3} parent=1 // pred_check
      _
    $region31: #{bert_for_fit.3} parent=1 // pred_check_branch
      %36 = sbr.rel (0) target = $region33
    $region32: #{bert_for_fit.3} parent=1 // pred_region
      _
    $region33: #{bert_for_fit.3} parent=1 // pred_fallthru
      _
    // Predicated region
    $region34: #{bert_for_fit.3} parent=1 // pred_check
      _
    $region35: #{bert_for_fit.3} parent=1 // pred_check_branch
      %38 = sbr.rel (0) target = $region37
    $region36: #{bert_for_fit.3} parent=1 // pred_region
      %40 = dma.done [#allocation3], 16
    $region37: #{bert_for_fit.3} parent=1 // pred_fallthru
      _
    %41 = sfence
    %s42 = sld [smem:[#allocation2]]
    %s43 = scalar_lea.vmem %s1, %s42
    %v44 = vld [vmem:[%s43] sm:$0x1]
    %s45 = sld [smem:[#allocation2 + $0x1]]
    %s46 = scalar_lea.vmem %s1, %s45
    %v47 = vld [vmem:[%s46] sm:$0x1]
    %s48 = sld [smem:[#allocation2 + $0x2]]
    %s49 = scalar_lea.vmem %s1, %s48
    %v50 = vld [vmem:[%s49] sm:$0x1]
    %s51 = sld [smem:[#allocation2 + $0x3]]
    %s52 = scalar_lea.vmem %s1, %s51
    %v53 = vld [vmem:[%s52] sm:$0x1]
    %v55 = vrot.slane %v47, 7
    %v58 = vrot.slane %v50, 6
    %v61 = vrot.slane %v53, 5
    %vm63 = vcmask 1040384
    %v64 = vsel %vm63, %v44, %v55
    %vm65 = vcmask 1041408
    %v66 = vsel %vm65, %v64, %v58
    %vm67 = vcmask 1042432
    %v68 = vsel %vm67, %v66, %v61
    %v69 = vld [vmem:[%s2] sm:$0xff]
    %v70 = vld [vmem:[%s2 + $0x8] sm:$0xff]
    %v71 = vld [vmem:[%s2 + $0x10] sm:$0xff]
    %v72 = vld [vmem:[%s2 + $0x18] sm:$0xff]
    %v73 = vld [vmem:[%s3] sm:$0x1]
    %v75 = vperm.slane %v73, 0
    %vm77 = vcmask 261120
    %v79 = vsel %vm77, %v68, 0
    %81 = vmatpush.msra.mxu0 0.0
    %82 = vmatpush.msra.mxu0 0.0
    %83 = vmatpush.msra.mxu0 0.0
    %84 = vmatpush.msra.mxu0 0.0
    %85 = vmatpush.msra.mxu0 0.0
    %86 = vmatpush.msra.mxu0 0.0
    %87 = vmatpush.msra.mxu0 0.0
    %88 = vmatpush.msra.mxu0 0.0
    %89 = vmatpush.msra.mxu0 0.0
    %90 = vmatpush.msra.mxu0 0.0
    %91 = vmatpush.msra.mxu0 0.0
    %92 = vmatpush.msra.mxu0 0.0
    %93 = vmatpush.msra.mxu0 %v72
    %94 = vmatpush.msra.mxu0 %v71
    %95 = vmatpush.msra.mxu0 %v70
    %96 = vmatpush.msra.mxu0 %v69
    %97 = vmatmul.f32.gmra.mxu0 %v79
    %v98 = vpop.f32.mrf.mxu0
    %v99 = vadd.f32 %v75, %v98
    %100 = vdwg.mxu0
    %v101 = vmul.f32 %v99, 0.5
    %v102 = vmul.f32 %v99, 0.044715
    %v103 = vmul.f32 %v102, %v99
    %v104 = vmul.f32 %v103, %v99
    %v105 = vadd.f32 %v99, %v104
    %v106 = vmul.f32 %v105, 0.7978846
    %v107 = vtanh.pop %v106
    %v108 = vadd.f32 %v107, 1.0
    %v109 = vmul.f32 %v101, %v108
    %v110 = vld [vmem:[%s4] sm:$0x1]
    %v111 = vld [vmem:[%s5] sm:$0x1]
    %vm112 = vcmask 257024
    %v113 = vsel %vm112, %v109, 0.0
    %114 = vadd.xlane.f32.xlu0 %v113
    %v115 = vpop.xlane.xlu0 %114
    %v116 = vrcp.pop 32.0
    %v117 = vmul.f32 32.0, %v116
    %v118 = vsub.f32 1.0, %v117
    %v119 = vmul.f32 %v116, %v118
    %v120 = vadd.f32 %v116, %v119
    %vm121 = vweird.f32 %v116
    %v122 = vsel %vm121, %v116, %v120
    %v123 = vmul.f32 %v115, %v122
    %v124 = vsub.f32 %v109, %v123
    %v125 = vmul.f32 %v124, %v124
    %v126 = vsel %vm112, %v125, 0.0
    %127 = vadd.xlane.f32.xlu0 %v126
    %v128 = vpop.xlane.xlu0 %127
    %v129 = vmul.f32 %v128, %v122
    %v130 = vadd.f32 %v129, 1e-12
    %v131 = vrsqrt.pop %v130
    %v132 = vmul.f32 %v131, %v130
    %v133 = vmul.f32 %v132, %v131
    %v134 = vmul.f32 0.5, %v133
    %v135 = vsub.f32 1.5, %v134
    %v136 = vmul.f32 %v131, %v135
    %vm137 = vweird.f32 %v130
    %vm138 = vweird.f32 %v131
    %vm139 = vmor %vm137, %vm138
    %v140 = vsel %vm139, %v131, %v136
    %v141 = vmul.f32 %v124, %v140
    %v143 = vperm.slane %v110, 0
    %v145 = vmul.f32 %v141, %v143
    %v147 = vperm.slane %v111, 0
    %v149 = vadd.f32 %v145, %v147
    %v150 = vld [vmem:[%s6] sm:$0xff]
    %v151 = vld [vmem:[%s6 + $0x8] sm:$0xff]
    %v152 = vld [vmem:[%s6 + $0x10] sm:$0xff]
    %v153 = vld [vmem:[%s6 + $0x18] sm:$0xff]
    %v154 = vld [vmem:[%s6 + $0x20] sm:$0xff]
    %v155 = vld [vmem:[%s6 + $0x28] sm:$0xff]
    %v156 = vld [vmem:[%s6 + $0x30] sm:$0xff]
    %v157 = vld [vmem:[%s6 + $0x38] sm:$0xff]
    %v158 = vld [vmem:[%s7] sm:$0x1]
    %v160 = vperm.slane %v158, 0
    %v163 = vsel %vm77, %v149, 0
    %v166 = vsel %vm77, %v150, 0
    %v169 = vsel %vm77, %v151, 0
    %v172 = vsel %vm77, %v152, 0
    %v175 = vsel %vm77, %v153, 0
    %v178 = vsel %vm77, %v154, 0
    %v181 = vsel %vm77, %v155, 0
    %v184 = vsel %vm77, %v156, 0
    %v187 = vsel %vm77, %v157, 0
    %189 = vmatpush.xpose.msra.mxu0 0.0
    %190 = vmatpush.xpose.msra.mxu0 0.0
    %191 = vmatpush.xpose.msra.mxu0 0.0
    %192 = vmatpush.xpose.msra.mxu0 0.0
    %193 = vmatpush.xpose.msra.mxu0 0.0
    %194 = vmatpush.xpose.msra.mxu0 0.0
    %195 = vmatpush.xpose.msra.mxu0 0.0
    %196 = vmatpush.xpose.msra.mxu0 0.0
    %197 = vmatpush.xpose.msra.mxu0 %v187
    %198 = vmatpush.xpose.msra.mxu0 %v184
    %199 = vmatpush.xpose.msra.mxu0 %v181
    %200 = vmatpush.xpose.msra.mxu0 %v178
    %201 = vmatpush.xpose.msra.mxu0 %v175
    %202 = vmatpush.xpose.msra.mxu0 %v172
    %203 = vmatpush.xpose.msra.mxu0 %v169
    %204 = vmatpush.xpose.msra.mxu0 %v166
    %205 = vmatmul.f32.gmra.mxu0 %v163
    %v206 = vpop.f32.mrf.mxu0
    %v207 = vadd.f32 %v160, %v206
    %208 = vdwg.mxu0
    %vm209 = vcmask 519168
    %210 = vst.msk [vmem:[%s8] sm:$0xf] %vm209, %v207
    // Predicated region
    $region38: #{bert_for_fit.3} parent=1 // pred_check
      _
    $region39: #{bert_for_fit.3} parent=1 // pred_check_branch
      %212 = sbr.rel (0) target = $region41
    $region40: #{bert_for_fit.3} parent=1 // pred_region
      _
    $region41: #{bert_for_fit.3} parent=1 // pred_fallthru
      _
    // Predicated region
    $region42: #{bert_for_fit.3} parent=1 // pred_check
      _
    $region43: #{bert_for_fit.3} parent=1 // pred_check_branch
      %214 = sbr.rel (0) target = $region45
    $region44: #{bert_for_fit.3} parent=1 // pred_region
      _
    $region45: #{bert_for_fit.3} parent=1 // pred_fallthru
      _
    %215 = vsyncpa [#allocation3], 1

// kernel: eq.3
$region0: #{eq.3}
  #allocation0 [shape = 's32[1]{0}', space=sflag, size = 0x4, scoped, tag = 'scoped memory for eq.3']
  %s0 = inlined_call_operand.vmem [shape: s32[4], index: 0, kind: input, shape index: {}]
  %s1 = inlined_call_operand.vmem [shape: s32[4], index: 1, kind: input, shape index: {}]
  %s2 = inlined_call_operand.vmem [shape: pred[4], index: 2, kind: output, shape index: {}]
  %v3 = vld [vmem:[%s0] sm:$0x1]
  %v4 = vld [vmem:[%s1] sm:$0x1]
  %5 = xla_tuple %v3, %v4
  %6 = xla_tuple %5
  %vm7 = vcmp.eq.s32.totalorder %v3, %v4
  %v8 = vsel %vm7, 1, 0
  %9 = xla_tuple %v8
  %v10 = vpack.c.b16 0, %v8
  %v11 = vpack.c.b8 0, %v10
  %s13 = ssub.s32 2, 1
  %14 = vst [vmem:[%s2] sm:%s13] %v11

// kernel: bert_for_fit.2
$region0: #{bert_for_fit.2}
  #allocation0 [shape = 'u32[]', space=smem, size = 0x4, offset = 0x4, fixed_abs, tag = 'smem constant byte address 0x4 - core index']
  #allocation1 [shape = 'u32[72,128]{1,0:T(1,128)}', space=vmem, size = 0x9000, scoped, tag = 'internal scratch']
  %s0 = inlined_call_operand.vmem [shape: f32[32,32], index: 0, kind: input, shape index: {}]
  %s1 = inlined_call_operand.vmem [shape: f32[2,1,16], index: 1, kind: input, shape index: {}]
  %s2 = inlined_call_operand.vmem [shape: f32[1,32], index: 2, kind: input, shape index: {}]
  %s3 = inlined_call_operand.vmem [shape: f32[1,32], index: 3, kind: input, shape index: {}]
  %s4 = inlined_call_operand.vmem [shape: f32[2,32,96], index: 4, kind: input, shape index: {}]
  %s5 = inlined_call_operand.vmem [shape: f32[2,1,96], index: 5, kind: input, shape index: {}]
  %s6 = inlined_call_operand.vmem [shape: f32[2,32,32], index: 6, kind: input, shape index: {}]
  %s7 = inlined_call_operand.vmem [shape: f32[2,1,32], index: 7, kind: input, shape index: {}]
  %s8 = inlined_call_operand.vmem [shape: f32[2,1,32], index: 8, kind: input, shape index: {}]
  %s9 = inlined_call_operand.vmem [shape: f32[2,1,32], index: 9, kind: input, shape index: {}]
  %s10 = inlined_call_operand.vmem [shape: f32[2,32,64], index: 10, kind: input, shape index: {}]
  %s11 = inlined_call_operand.vmem [shape: f32[2,1,64], index: 11, kind: input, shape index: {}]
  %s12 = inlined_call_operand.vmem [shape: f32[2,64,32], index: 12, kind: input, shape index: {}]
  %s13 = inlined_call_operand.vmem [shape: f32[2,1,32], index: 13, kind: input, shape index: {}]
  %s14 = inlined_call_operand.vmem [shape: f32[2,1,32], index: 14, kind: input, shape index: {}]
  %s15 = inlined_call_operand.vmem [shape: f32[2,1,32], index: 15, kind: input, shape index: {}]
  %s16 = inlined_call_operand.vmem [shape: f32[32,32], index: 16, kind: output, shape index: {}]
  %s17 = sld [smem:[#allocation0]]
  $region101: #{bert_for_fit.2} parent=0
    _
  %s19 = ssub.s32 1, %s17
  %s20 = scalar_select 0, %s19, %s17
  loop: start=0, step=1, limit=6
  $region2: #{bert_for_fit.2} parent=0 // loop_pre_header
    _
  $region3: #{bert_for_fit.2} parent=0 // loop_header
    %s22 = sphi 0, %s26
    %p23 = scmp.ge.s32.totalorder %s22, 6
    %s29 = sphi 0, %s41
    %s30 = sphi 0, %s37
    %s31 = sphi 0, %s29
    %s32 = sphi 0, %s30
    %s33 = sphi 0, %s31
    %s34 = sphi 0, %s32
    %s44 = sphi 0, %s46
    %s47 = sphi 0, %s44
    %s48 = sphi 0, %s47
    %s64 = sphi 0, %s48
    %s70 = sphi 0, %s72
    %s73 = sphi 0, %s70
    %s74 = sphi 0, %s73
    %s90 = sphi 0, %s74
    %s94 = sphi 0, %s94
    %s96 = sphi 0, %s94
    %s97 = sphi 0, %s96
    %s111 = sphi 0, %s97
    %s115 = sphi 0, %s115
    %s117 = sphi 0, %s115
    %s118 = sphi 0, %s117
    %s132 = sphi 0, %s118
    %s138 = sphi 0, %s140
    %s141 = sphi 0, %s138
    %s142 = sphi 0, %s141
    %s158 = sphi 0, %s142
    %s164 = sphi 0, %s166
    %s167 = sphi 0, %s164
    %s168 = sphi 0, %s167
    %s184 = sphi 0, %s168
    %s190 = sphi 0, %s192
    %s193 = sphi 0, %s190
    %s194 = sphi 0, %s193
    %s210 = sphi 0, %s194
    %s216 = sphi 0, %s218
    %s219 = sphi 0, %s216
    %s220 = sphi 0, %s219
    %s236 = sphi 0, %s220
    %s242 = sphi 0, %s244
    %s245 = sphi 0, %s242
    %s246 = sphi 0, %s245
    %s262 = sphi 0, %s246
    %s268 = sphi 0, %s270
    %s271 = sphi 0, %s268
    %s272 = sphi 0, %s271
    %s288 = sphi 0, %s272
    %s294 = sphi 0, %s296
    %s297 = sphi 0, %s294
    %s298 = sphi 0, %s297
    %s314 = sphi 0, %s298
    %s320 = sphi 0, %s322
    %s323 = sphi 0, %s320
    %s324 = sphi 0, %s323
    %s340 = sphi 0, %s324
    %s346 = sphi 0, %s348
    %s349 = sphi 0, %s346
    %s350 = sphi 0, %s349
    %s366 = sphi 0, %s350
    %s372 = sphi 0, %s374
    %s375 = sphi 0, %s372
    %s376 = sphi 0, %s375
    %s392 = sphi 0, %s376
    %s398 = sphi 0, %s400
    %s401 = sphi 0, %s398
    %s402 = sphi 0, %s401
    %s418 = sphi 0, %s402
    %s424 = sphi 0, %s426
    %s427 = sphi 0, %s424
    %s428 = sphi 0, %s427
    %s444 = sphi 0, %s428
    %s450 = sphi 0, %s452
    %s453 = sphi 0, %s450
    %s454 = sphi 0, %s453
    %s470 = sphi 0, %s454
  $region4: #{bert_for_fit.2} parent=0 // loop_header_branch
    %25 = sbr.rel (%p23) target = $region8
  $region5: #{bert_for_fit.2} parent=0 // loop_body
    %s27 = ssub.s32 %s22, 1
    %s28 = ssub.s32 %s22, 2
    %s35 = sadd.s32 1, %s30
    %p36 = scmp.ge.s32.totalorder %s35, 2
    %s37 = scalar_select %p36, 0, %s35
    %s38 = sadd.s32 1, %s29
    %s39 = scalar_select %p36, %s38, %s29
    %p40 = scmp.ge.s32.totalorder %s39, 2
    %s41 = scalar_select %p40, 0, %s39
    %s42 = ssub.s32 %s29, %s41
    %p43 = scmp.eq.s32.totalorder %s42, 0
    %s45 = sadd.s32 %s44, 1
    %s46 = scalar_select %p43, %s44, %s45
    %p49 = pneg %p43
    %p50 = scmp.eq.s32.totalorder %s22, 3
    %p51 = por %p49, %p50
    %p52 = scmp.ne.s32.totalorder %s44, %s47
    %p53 = scmp.eq.s32.totalorder %s22, 0
    %p54 = por %p52, %p53
    %p55 = scmp.ne.s32.totalorder %s44, %s47
    %p56 = scmp.eq.s32.totalorder %s27, 3
    %p57 = por %p55, %p56
    %p58 = scmp.ne.s32.totalorder %s47, %s48
    %p59 = scmp.eq.s32.totalorder %s27, 0
    %p60 = por %p58, %p59
    %p61 = scmp.ne.s32.totalorder %s47, %s48
    %p62 = scmp.eq.s32.totalorder %s28, 3
    %p63 = por %p61, %p62
    %p65 = scmp.ne.s32.totalorder %s48, %s64
    %p66 = scmp.eq.s32.totalorder %s28, 0
    %p67 = por %p65, %p66
    %s68 = ssub.s32 %s29, %s41
    %p69 = scmp.eq.s32.totalorder %s68, 0
    %s71 = sadd.s32 %s70, 1
    %s72 = scalar_select %p69, %s70, %s71
    %p75 = pneg %p69
    %p76 = scmp.eq.s32.totalorder %s22, 3
    %p77 = por %p75, %p76
    %p78 = scmp.ne.s32.totalorder %s70, %s73
    %p79 = scmp.eq.s32.totalorder %s22, 0
    %p80 = por %p78, %p79
    %p81 = scmp.ne.s32.totalorder %s70, %s73
    %p82 = scmp.eq.s32.totalorder %s27, 3
    %p83 = por %p81, %p82
    %p84 = scmp.ne.s32.totalorder %s73, %s74
    %p85 = scmp.eq.s32.totalorder %s27, 0
    %p86 = por %p84, %p85
    %p87 = scmp.ne.s32.totalorder %s73, %s74
    %p88 = scmp.eq.s32.totalorder %s28, 3
    %p89 = por %p87, %p88
    %p91 = scmp.ne.s32.totalorder %s74, %s90
    %p92 = scmp.eq.s32.totalorder %s28, 0
    %p93 = por %p91, %p92
    %s95 = sadd.s32 %s94, 1
    %p98 = scmp.eq.s32.totalorder %s22, 3
    %p99 = scmp.ne.s32.totalorder %s94, %s96
    %p100 = scmp.eq.s32.totalorder %s22, 0
    %p101 = por %p99, %p100
    %p102 = scmp.ne.s32.totalorder %s94, %s96
    %p103 = scmp.eq.s32.totalorder %s27, 3
    %p104 = por %p102, %p103
    %p105 = scmp.ne.s32.totalorder %s96, %s97
    %p106 = scmp.eq.s32.totalorder %s27, 0
    %p107 = por %p105, %p106
    %p108 = scmp.ne.s32.totalorder %s96, %s97
    %p109 = scmp.eq.s32.totalorder %s28, 3
    %p110 = por %p108, %p109
    %p112 = scmp.ne.s32.totalorder %s97, %s111
    %p113 = scmp.eq.s32.totalorder %s28, 0
    %p114 = por %p112, %p113
    %s116 = sadd.s32 %s115, 1
    %p119 = scmp.eq.s32.totalorder %s22, 3
    %p120 = scmp.ne.s32.totalorder %s115, %s117
    %p121 = scmp.eq.s32.totalorder %s22, 0
    %p122 = por %p120, %p121
    %p123 = scmp.ne.s32.totalorder %s115, %s117
    %p124 = scmp.eq.s32.totalorder %s27, 3
    %p125 = por %p123, %p124
    %p126 = scmp.ne.s32.totalorder %s117, %s118
    %p127 = scmp.eq.s32.totalorder %s27, 0
    %p128 = por %p126, %p127
    %p129 = scmp.ne.s32.totalorder %s117, %s118
    %p130 = scmp.eq.s32.totalorder %s28, 3
    %p131 = por %p129, %p130
    %p133 = scmp.ne.s32.totalorder %s118, %s132
    %p134 = scmp.eq.s32.totalorder %s28, 0
    %p135 = por %p133, %p134
    %s136 = ssub.s32 %s30, %s37
    %p137 = scmp.eq.s32.totalorder %s136, 0
    %s139 = sadd.s32 %s138, 1
    %s140 = scalar_select %p137, %s138, %s139
    %p143 = pneg %p137
    %p144 = scmp.eq.s32.totalorder %s22, 3
    %p145 = por %p143, %p144
    %p146 = scmp.ne.s32.totalorder %s138, %s141
    %p147 = scmp.eq.s32.totalorder %s22, 0
    %p148 = por %p146, %p147
    %p149 = scmp.ne.s32.totalorder %s138, %s141
    %p150 = scmp.eq.s32.totalorder %s27, 3
    %p151 = por %p149, %p150
    %p152 = scmp.ne.s32.totalorder %s141, %s142
    %p153 = scmp.eq.s32.totalorder %s27, 0
    %p154 = por %p152, %p153
    %p155 = scmp.ne.s32.totalorder %s141, %s142
    %p156 = scmp.eq.s32.totalorder %s28, 3
    %p157 = por %p155, %p156
    %p159 = scmp.ne.s32.totalorder %s142, %s158
    %p160 = scmp.eq.s32.totalorder %s28, 0
    %p161 = por %p159, %p160
    %s162 = ssub.s32 %s30, %s37
    %p163 = scmp.eq.s32.totalorder %s162, 0
    %s165 = sadd.s32 %s164, 1
    %s166 = scalar_select %p163, %s164, %s165
    %p169 = pneg %p163
    %p170 = scmp.eq.s32.totalorder %s22, 3
    %p171 = por %p169, %p170
    %p172 = scmp.ne.s32.totalorder %s164, %s167
    %p173 = scmp.eq.s32.totalorder %s22, 0
    %p174 = por %p172, %p173
    %p175 = scmp.ne.s32.totalorder %s164, %s167
    %p176 = scmp.eq.s32.totalorder %s27, 3
    %p177 = por %p175, %p176
    %p178 = scmp.ne.s32.totalorder %s167, %s168
    %p179 = scmp.eq.s32.totalorder %s27, 0
    %p180 = por %p178, %p179
    %p181 = scmp.ne.s32.totalorder %s167, %s168
    %p182 = scmp.eq.s32.totalorder %s28, 3
    %p183 = por %p181, %p182
    %p185 = scmp.ne.s32.totalorder %s168, %s184
    %p186 = scmp.eq.s32.totalorder %s28, 0
    %p187 = por %p185, %p186
    %s188 = ssub.s32 %s30, %s37
    %p189 = scmp.eq.s32.totalorder %s188, 0
    %s191 = sadd.s32 %s190, 1
    %s192 = scalar_select %p189, %s190, %s191
    %p195 = pneg %p189
    %p196 = scmp.eq.s32.totalorder %s22, 3
    %p197 = por %p195, %p196
    %p198 = scmp.ne.s32.totalorder %s190, %s193
    %p199 = scmp.eq.s32.totalorder %s22, 0
    %p200 = por %p198, %p199
    %p201 = scmp.ne.s32.totalorder %s190, %s193
    %p202 = scmp.eq.s32.totalorder %s27, 3
    %p203 = por %p201, %p202
    %p204 = scmp.ne.s32.totalorder %s193, %s194
    %p205 = scmp.eq.s32.totalorder %s27, 0
    %p206 = por %p204, %p205
    %p207 = scmp.ne.s32.totalorder %s193, %s194
    %p208 = scmp.eq.s32.totalorder %s28, 3
    %p209 = por %p207, %p208
    %p211 = scmp.ne.s32.totalorder %s194, %s210
    %p212 = scmp.eq.s32.totalorder %s28, 0
    %p213 = por %p211, %p212
    %s214 = ssub.s32 %s30, %s37
    %p215 = scmp.eq.s32.totalorder %s214, 0
    %s217 = sadd.s32 %s216, 1
    %s218 = scalar_select %p215, %s216, %s217
    %p221 = pneg %p215
    %p222 = scmp.eq.s32.totalorder %s22, 3
    %p223 = por %p221, %p222
    %p224 = scmp.ne.s32.totalorder %s216, %s219
    %p225 = scmp.eq.s32.totalorder %s22, 0
    %p226 = por %p224, %p225
    %p227 = scmp.ne.s32.totalorder %s216, %s219
    %p228 = scmp.eq.s32.totalorder %s27, 3
    %p229 = por %p227, %p228
    %p230 = scmp.ne.s32.totalorder %s219, %s220
    %p231 = scmp.eq.s32.totalorder %s27, 0
    %p232 = por %p230, %p231
    %p233 = scmp.ne.s32.totalorder %s219, %s220
    %p234 = scmp.eq.s32.totalorder %s28, 3
    %p235 = por %p233, %p234
    %p237 = scmp.ne.s32.totalorder %s220, %s236
    %p238 = scmp.eq.s32.totalorder %s28, 0
    %p239 = por %p237, %p238
    %s240 = ssub.s32 %s30, %s37
    %p241 = scmp.eq.s32.totalorder %s240, 0
    %s243 = sadd.s32 %s242, 1
    %s244 = scalar_select %p241, %s242, %s243
    %p247 = pneg %p241
    %p248 = scmp.eq.s32.totalorder %s22, 3
    %p249 = por %p247, %p248
    %p250 = scmp.ne.s32.totalorder %s242, %s245
    %p251 = scmp.eq.s32.totalorder %s22, 0
    %p252 = por %p250, %p251
    %p253 = scmp.ne.s32.totalorder %s242, %s245
    %p254 = scmp.eq.s32.totalorder %s27, 3
    %p255 = por %p253, %p254
    %p256 = scmp.ne.s32.totalorder %s245, %s246
    %p257 = scmp.eq.s32.totalorder %s27, 0
    %p258 = por %p256, %p257
    %p259 = scmp.ne.s32.totalorder %s245, %s246
    %p260 = scmp.eq.s32.totalorder %s28, 3
    %p261 = por %p259, %p260
    %p263 = scmp.ne.s32.totalorder %s246, %s262
    %p264 = scmp.eq.s32.totalorder %s28, 0
    %p265 = por %p263, %p264
    %s266 = ssub.s32 %s30, %s37
    %p267 = scmp.eq.s32.totalorder %s266, 0
    %s269 = sadd.s32 %s268, 1
    %s270 = scalar_select %p267, %s268, %s269
    %p273 = pneg %p267
    %p274 = scmp.eq.s32.totalorder %s22, 3
    %p275 = por %p273, %p274
    %p276 = scmp.ne.s32.totalorder %s268, %s271
    %p277 = scmp.eq.s32.totalorder %s22, 0
    %p278 = por %p276, %p277
    %p279 = scmp.ne.s32.totalorder %s268, %s271
    %p280 = scmp.eq.s32.totalorder %s27, 3
    %p281 = por %p279, %p280
    %p282 = scmp.ne.s32.totalorder %s271, %s272
    %p283 = scmp.eq.s32.totalorder %s27, 0
    %p284 = por %p282, %p283
    %p285 = scmp.ne.s32.totalorder %s271, %s272
    %p286 = scmp.eq.s32.totalorder %s28, 3
    %p287 = por %p285, %p286
    %p289 = scmp.ne.s32.totalorder %s272, %s288
    %p290 = scmp.eq.s32.totalorder %s28, 0
    %p291 = por %p289, %p290
    %s292 = ssub.s32 %s30, %s37
    %p293 = scmp.eq.s32.totalorder %s292, 0
    %s295 = sadd.s32 %s294, 1
    %s296 = scalar_select %p293, %s294, %s295
    %p299 = pneg %p293
    %p300 = scmp.eq.s32.totalorder %s22, 3
    %p301 = por %p299, %p300
    %p302 = scmp.ne.s32.totalorder %s294, %s297
    %p303 = scmp.eq.s32.totalorder %s22, 0
    %p304 = por %p302, %p303
    %p305 = scmp.ne.s32.totalorder %s294, %s297
    %p306 = scmp.eq.s32.totalorder %s27, 3
    %p307 = por %p305, %p306
    %p308 = scmp.ne.s32.totalorder %s297, %s298
    %p309 = scmp.eq.s32.totalorder %s27, 0
    %p310 = por %p308, %p309
    %p311 = scmp.ne.s32.totalorder %s297, %s298
    %p312 = scmp.eq.s32.totalorder %s28, 3
    %p313 = por %p311, %p312
    %p315 = scmp.ne.s32.totalorder %s298, %s314
    %p316 = scmp.eq.s32.totalorder %s28, 0
    %p317 = por %p315, %p316
    %s318 = ssub.s32 %s30, %s37
    %p319 = scmp.eq.s32.totalorder %s318, 0
    %s321 = sadd.s32 %s320, 1
    %s322 = scalar_select %p319, %s320, %s321
    %p325 = pneg %p319
    %p326 = scmp.eq.s32.totalorder %s22, 3
    %p327 = por %p325, %p326
    %p328 = scmp.ne.s32.totalorder %s320, %s323
    %p329 = scmp.eq.s32.totalorder %s22, 0
    %p330 = por %p328, %p329
    %p331 = scmp.ne.s32.totalorder %s320, %s323
    %p332 = scmp.eq.s32.totalorder %s27, 3
    %p333 = por %p331, %p332
    %p334 = scmp.ne.s32.totalorder %s323, %s324
    %p335 = scmp.eq.s32.totalorder %s27, 0
    %p336 = por %p334, %p335
    %p337 = scmp.ne.s32.totalorder %s323, %s324
    %p338 = scmp.eq.s32.totalorder %s28, 3
    %p339 = por %p337, %p338
    %p341 = scmp.ne.s32.totalorder %s324, %s340
    %p342 = scmp.eq.s32.totalorder %s28, 0
    %p343 = por %p341, %p342
    %s344 = ssub.s32 %s30, %s37
    %p345 = scmp.eq.s32.totalorder %s344, 0
    %s347 = sadd.s32 %s346, 1
    %s348 = scalar_select %p345, %s346, %s347
    %p351 = pneg %p345
    %p352 = scmp.eq.s32.totalorder %s22, 3
    %p353 = por %p351, %p352
    %p354 = scmp.ne.s32.totalorder %s346, %s349
    %p355 = scmp.eq.s32.totalorder %s22, 0
    %p356 = por %p354, %p355
    %p357 = scmp.ne.s32.totalorder %s346, %s349
    %p358 = scmp.eq.s32.totalorder %s27, 3
    %p359 = por %p357, %p358
    %p360 = scmp.ne.s32.totalorder %s349, %s350
    %p361 = scmp.eq.s32.totalorder %s27, 0
    %p362 = por %p360, %p361
    %p363 = scmp.ne.s32.totalorder %s349, %s350
    %p364 = scmp.eq.s32.totalorder %s28, 3
    %p365 = por %p363, %p364
    %p367 = scmp.ne.s32.totalorder %s350, %s366
    %p368 = scmp.eq.s32.totalorder %s28, 0
    %p369 = por %p367, %p368
    %s370 = ssub.s32 %s30, %s37
    %p371 = scmp.eq.s32.totalorder %s370, 0
    %s373 = sadd.s32 %s372, 1
    %s374 = scalar_select %p371, %s372, %s373
    %p377 = pneg %p371
    %p378 = scmp.eq.s32.totalorder %s22, 3
    %p379 = por %p377, %p378
    %p380 = scmp.ne.s32.totalorder %s372, %s375
    %p381 = scmp.eq.s32.totalorder %s22, 0
    %p382 = por %p380, %p381
    %p383 = scmp.ne.s32.totalorder %s372, %s375
    %p384 = scmp.eq.s32.totalorder %s27, 3
    %p385 = por %p383, %p384
    %p386 = scmp.ne.s32.totalorder %s375, %s376
    %p387 = scmp.eq.s32.totalorder %s27, 0
    %p388 = por %p386, %p387
    %p389 = scmp.ne.s32.totalorder %s375, %s376
    %p390 = scmp.eq.s32.totalorder %s28, 3
    %p391 = por %p389, %p390
    %p393 = scmp.ne.s32.totalorder %s376, %s392
    %p394 = scmp.eq.s32.totalorder %s28, 0
    %p395 = por %p393, %p394
    %s396 = ssub.s32 %s30, %s37
    %p397 = scmp.eq.s32.totalorder %s396, 0
    %s399 = sadd.s32 %s398, 1
    %s400 = scalar_select %p397, %s398, %s399
    %p403 = pneg %p397
    %p404 = scmp.eq.s32.totalorder %s22, 3
    %p405 = por %p403, %p404
    %p406 = scmp.ne.s32.totalorder %s398, %s401
    %p407 = scmp.eq.s32.totalorder %s22, 0
    %p408 = por %p406, %p407
    %p409 = scmp.ne.s32.totalorder %s398, %s401
    %p410 = scmp.eq.s32.totalorder %s27, 3
    %p411 = por %p409, %p410
    %p412 = scmp.ne.s32.totalorder %s401, %s402
    %p413 = scmp.eq.s32.totalorder %s27, 0
    %p414 = por %p412, %p413
    %p415 = scmp.ne.s32.totalorder %s401, %s402
    %p416 = scmp.eq.s32.totalorder %s28, 3
    %p417 = por %p415, %p416
    %p419 = scmp.ne.s32.totalorder %s402, %s418
    %p420 = scmp.eq.s32.totalorder %s28, 0
    %p421 = por %p419, %p420
    %s422 = ssub.s32 %s30, %s37
    %p423 = scmp.eq.s32.totalorder %s422, 0
    %s425 = sadd.s32 %s424, 1
    %s426 = scalar_select %p423, %s424, %s425
    %p429 = pneg %p423
    %p430 = scmp.eq.s32.totalorder %s22, 3
    %p431 = por %p429, %p430
    %p432 = scmp.ne.s32.totalorder %s424, %s427
    %p433 = scmp.eq.s32.totalorder %s22, 0
    %p434 = por %p432, %p433
    %p435 = scmp.ne.s32.totalorder %s424, %s427
    %p436 = scmp.eq.s32.totalorder %s27, 3
    %p437 = por %p435, %p436
    %p438 = scmp.ne.s32.totalorder %s427, %s428
    %p439 = scmp.eq.s32.totalorder %s27, 0
    %p440 = por %p438, %p439
    %p441 = scmp.ne.s32.totalorder %s427, %s428
    %p442 = scmp.eq.s32.totalorder %s28, 3
    %p443 = por %p441, %p442
    %p445 = scmp.ne.s32.totalorder %s428, %s444
    %p446 = scmp.eq.s32.totalorder %s28, 0
    %p447 = por %p445, %p446
    %s448 = ssub.s32 %s29, %s41
    %p449 = scmp.eq.s32.totalorder %s448, 0
    %s451 = sadd.s32 %s450, 1
    %s452 = scalar_select %p449, %s450, %s451
    %p455 = pneg %p449
    %p456 = scmp.eq.s32.totalorder %s22, 3
    %p457 = por %p455, %p456
    %p458 = scmp.ne.s32.totalorder %s450, %s453
    %p459 = scmp.eq.s32.totalorder %s22, 0
    %p460 = por %p458, %p459
    %p461 = scmp.ne.s32.totalorder %s450, %s453
    %p462 = scmp.eq.s32.totalorder %s27, 3
    %p463 = por %p461, %p462
    %p464 = scmp.ne.s32.totalorder %s453, %s454
    %p465 = scmp.eq.s32.totalorder %s27, 0
    %p466 = por %p464, %p465
    %p467 = scmp.ne.s32.totalorder %s453, %s454
    %p468 = scmp.eq.s32.totalorder %s28, 3
    %p469 = por %p467, %p468
    %p471 = scmp.ne.s32.totalorder %s454, %s470
    %p472 = scmp.eq.s32.totalorder %s28, 0
    %p473 = por %p471, %p472
    %p474 = scmp.le.s32.totalorder 1, %s22
    %p475 = scmp.lt.s32.totalorder %s22, 5
    %p476 = pnand %p474, %p475
    %p477 = pneg %p476
    // Predicated region
    $region9: #{bert_for_fit.2} parent=5 // pred_check
      _
    $region10: #{bert_for_fit.2} parent=5 // pred_check_branch
      %479 = sbr.rel (%p476) target = $region12
    $region11: #{bert_for_fit.2} parent=5 // pred_region
      %s480 = ssub.s32 %s22, 1
      // Predicated region
      $region13: #{bert_for_fit.2} parent=11 // pred_check
        %p481 = pneg %p107
      $region14: #{bert_for_fit.2} parent=11 // pred_check_branch
        %483 = sbr.rel (%p481) target = $region16
      $region15: #{bert_for_fit.2} parent=11 // pred_region
        _
      $region16: #{bert_for_fit.2} parent=11 // pred_fallthru
        _
      // Predicated region
      $region17: #{bert_for_fit.2} parent=11 // pred_check
        %p484 = pneg %p128
      $region18: #{bert_for_fit.2} parent=11 // pred_check_branch
        %486 = sbr.rel (%p484) target = $region20
      $region19: #{bert_for_fit.2} parent=11 // pred_region
        _
      $region20: #{bert_for_fit.2} parent=11 // pred_fallthru
        _
    $region12: #{bert_for_fit.2} parent=5 // pred_fallthru
      _
    %p487 = scmp.lt.s32.totalorder %s22, 4
    // Predicated region
    $region21: #{bert_for_fit.2} parent=5 // pred_check
      %p488 = pneg %p487
    $region22: #{bert_for_fit.2} parent=5 // pred_check_branch
      %490 = sbr.rel (%p488) target = $region24
    $region23: #{bert_for_fit.2} parent=5 // pred_region
      // Predicated region
      $region25: #{bert_for_fit.2} parent=23 // pred_check
        %p491 = pneg %p54
      $region26: #{bert_for_fit.2} parent=23 // pred_check_branch
        %493 = sbr.rel (%p491) target = $region28
      $region27: #{bert_for_fit.2} parent=23 // pred_region
        %s494 = smul.u32 2, %s29
        %p495 = scmp.lt.s32.totalorder %s494, 3
        %s496 = scalar_select %p495, %s494, 3
        %s497 = smul.addr %s496, 8
        %s498 = scalar_lea.vmem %s0, %s497
        %s499 = smul.u32 2, %s29
      $region28: #{bert_for_fit.2} parent=23 // pred_fallthru
        _
      // Predicated region
      $region29: #{bert_for_fit.2} parent=23 // pred_check
        %p500 = pneg %p80
      $region30: #{bert_for_fit.2} parent=23 // pred_check_branch
        %502 = sbr.rel (%p500) target = $region32
      $region31: #{bert_for_fit.2} parent=23 // pred_region
        %p503 = scmp.lt.s32.totalorder %s29, 1
        %s504 = scalar_select %p503, %s29, 1
        %s505 = scalar_lea.vmem %s1, %s504
      $region32: #{bert_for_fit.2} parent=23 // pred_fallthru
        _
      // Predicated region
      $region33: #{bert_for_fit.2} parent=23 // pred_check
        %p506 = pneg %p148
      $region34: #{bert_for_fit.2} parent=23 // pred_check_branch
        %508 = sbr.rel (%p506) target = $region36
      $region35: #{bert_for_fit.2} parent=23 // pred_region
        %p509 = scmp.lt.s32.totalorder %s30, 1
        %s510 = scalar_select %p509, %s30, 1
        %s511 = smul.addr %s510, 4
        %s512 = smul.addr %s511, 8
        %s513 = scalar_lea.vmem %s4, %s512
      $region36: #{bert_for_fit.2} parent=23 // pred_fallthru
        _
      // Predicated region
      $region37: #{bert_for_fit.2} parent=23 // pred_check
        %p514 = pneg %p174
      $region38: #{bert_for_fit.2} parent=23 // pred_check_branch
        %516 = sbr.rel (%p514) target = $region40
      $region39: #{bert_for_fit.2} parent=23 // pred_region
        %p517 = scmp.lt.s32.totalorder %s30, 1
        %s518 = scalar_select %p517, %s30, 1
        %s519 = scalar_lea.vmem %s5, %s518
      $region40: #{bert_for_fit.2} parent=23 // pred_fallthru
        _
      // Predicated region
      $region41: #{bert_for_fit.2} parent=23 // pred_check
        %p520 = pneg %p200
      $region42: #{bert_for_fit.2} parent=23 // pred_check_branch
        %522 = sbr.rel (%p520) target = $region44
      $region43: #{bert_for_fit.2} parent=23 // pred_region
        %p523 = scmp.lt.s32.totalorder %s30, 1
        %s524 = scalar_select %p523, %s30, 1
        %s525 = smul.addr %s524, 4
        %s526 = smul.addr %s525, 8
        %s527 = scalar_lea.vmem %s6, %s526
      $region44: #{bert_for_fit.2} parent=23 // pred_fallthru
        _
      // Predicated region
      $region45: #{bert_for_fit.2} parent=23 // pred_check
        %p528 = pneg %p226
      $region46: #{bert_for_fit.2} parent=23 // pred_check_branch
        %530 = sbr.rel (%p528) target = $region48
      $region47: #{bert_for_fit.2} parent=23 // pred_region
        %p531 = scmp.lt.s32.totalorder %s30, 1
        %s532 = scalar_select %p531, %s30, 1
        %s533 = scalar_lea.vmem %s7, %s532
      $region48: #{bert_for_fit.2} parent=23 // pred_fallthru
        _
      // Predicated region
      $region49: #{bert_for_fit.2} parent=23 // pred_check
        %p534 = pneg %p252
      $region50: #{bert_for_fit.2} parent=23 // pred_check_branch
        %536 = sbr.rel (%p534) target = $region52
      $region51: #{bert_for_fit.2} parent=23 // pred_region
        %p537 = scmp.lt.s32.totalorder %s30, 1
        %s538 = scalar_select %p537, %s30, 1
        %s539 = scalar_lea.vmem %s8, %s538
      $region52: #{bert_for_fit.2} parent=23 // pred_fallthru
        _
      // Predicated region
      $region53: #{bert_for_fit.2} parent=23 // pred_check
        %p540 = pneg %p278
      $region54: #{bert_for_fit.2} parent=23 // pred_check_branch
        %542 = sbr.rel (%p540) target = $region56
      $region55: #{bert_for_fit.2} parent=23 // pred_region
        %p543 = scmp.lt.s32.totalorder %s30, 1
        %s544 = scalar_select %p543, %s30, 1
        %s545 = scalar_lea.vmem %s9, %s544
      $region56: #{bert_for_fit.2} parent=23 // pred_fallthru
        _
      // Predicated region
      $region57: #{bert_for_fit.2} parent=23 // pred_check
        %p546 = pneg %p304
      $region58: #{bert_for_fit.2} parent=23 // pred_check_branch
        %548 = sbr.rel (%p546) target = $region60
      $region59: #{bert_for_fit.2} parent=23 // pred_region
        %p549 = scmp.lt.s32.totalorder %s30, 1
        %s550 = scalar_select %p549, %s30, 1
        %s551 = smul.addr %s550, 4
        %s552 = smul.addr %s551, 8
        %s553 = scalar_lea.vmem %s10, %s552
      $region60: #{bert_for_fit.2} parent=23 // pred_fallthru
        _
      // Predicated region
      $region61: #{bert_for_fit.2} parent=23 // pred_check
        %p554 = pneg %p330
      $region62: #{bert_for_fit.2} parent=23 // pred_check_branch
        %556 = sbr.rel (%p554) target = $region64
      $region63: #{bert_for_fit.2} parent=23 // pred_region
        %p557 = scmp.lt.s32.totalorder %s30, 1
        %s558 = scalar_select %p557, %s30, 1
        %s559 = scalar_lea.vmem %s11, %s558
      $region64: #{bert_for_fit.2} parent=23 // pred_fallthru
        _
      // Predicated region
      $region65: #{bert_for_fit.2} parent=23 // pred_check
        %p560 = pneg %p356
      $region66: #{bert_for_fit.2} parent=23 // pred_check_branch
        %562 = sbr.rel (%p560) target = $region68
      $region67: #{bert_for_fit.2} parent=23 // pred_region
        %p563 = scmp.lt.s32.totalorder %s30, 1
        %s564 = scalar_select %p563, %s30, 1
        %s565 = smul.addr %s564, 8
        %s566 = smul.addr %s565, 8
        %s567 = scalar_lea.vmem %s12, %s566
      $region68: #{bert_for_fit.2} parent=23 // pred_fallthru
        _
      // Predicated region
      $region69: #{bert_for_fit.2} parent=23 // pred_check
        %p568 = pneg %p382
      $region70: #{bert_for_fit.2} parent=23 // pred_check_branch
        %570 = sbr.rel (%p568) target = $region72
      $region71: #{bert_for_fit.2} parent=23 // pred_region
        %p571 = scmp.lt.s32.totalorder %s30, 1
        %s572 = scalar_select %p571, %s30, 1
        %s573 = scalar_lea.vmem %s13, %s572
      $region72: #{bert_for_fit.2} parent=23 // pred_fallthru
        _
      // Predicated region
      $region73: #{bert_for_fit.2} parent=23 // pred_check
        %p574 = pneg %p408
      $region74: #{bert_for_fit.2} parent=23 // pred_check_branch
        %576 = sbr.rel (%p574) target = $region76
      $region75: #{bert_for_fit.2} parent=23 // pred_region
        %p577 = scmp.lt.s32.totalorder %s30, 1
        %s578 = scalar_select %p577, %s30, 1
        %s579 = scalar_lea.vmem %s14, %s578
      $region76: #{bert_for_fit.2} parent=23 // pred_fallthru
        _
      // Predicated region
      $region77: #{bert_for_fit.2} parent=23 // pred_check
        %p580 = pneg %p434
      $region78: #{bert_for_fit.2} parent=23 // pred_check_branch
        %582 = sbr.rel (%p580) target = $region80
      $region79: #{bert_for_fit.2} parent=23 // pred_region
        %p583 = scmp.lt.s32.totalorder %s30, 1
        %s584 = scalar_select %p583, %s30, 1
        %s585 = scalar_lea.vmem %s15, %s584
      $region80: #{bert_for_fit.2} parent=23 // pred_fallthru
        _
    $region24: #{bert_for_fit.2} parent=5 // pred_fallthru
      _
    %p586 = scmp.le.s32.totalorder 1, %s22
    %p587 = scmp.lt.s32.totalorder %s22, 5
    %p588 = pnand %p586, %p587
    %p589 = pneg %p588
    // Predicated region
    $region81: #{bert_for_fit.2} parent=5 // pred_check
      _
    $region82: #{bert_for_fit.2} parent=5 // pred_check_branch
      %591 = sbr.rel (%p588) target = $region84
    $region83: #{bert_for_fit.2} parent=5 // pred_region
      %s592 = ssub.s32 %s22, 1
      %s593 = smul.u32 2, %s31
      %p594 = scmp.lt.s32.totalorder %s593, 3
      %s595 = scalar_select %p594, %s593, 3
      %s596 = smul.addr %s595, 8
      %s597 = scalar_lea.vmem %s0, %s596
      %p598 = pneg %p60
      %p599 = pneg %p57
      %p600 = scmp.lt.s32.totalorder %s31, 1
      %s601 = scalar_select %p600, %s31, 1
      %s602 = scalar_lea.vmem %s1, %s601
      %p603 = pneg %p86
      %p604 = pneg %p83
      %p605 = pneg %p107
      %p606 = pneg %p104
      %p607 = pneg %p128
      %p608 = pneg %p125
      %p609 = scmp.lt.s32.totalorder %s32, 1
      %s610 = scalar_select %p609, %s32, 1
      %s611 = smul.addr %s610, 4
      %s612 = smul.addr %s611, 8
      %s613 = scalar_lea.vmem %s4, %s612
      %p614 = pneg %p154
      %p615 = pneg %p151
      %p616 = scmp.lt.s32.totalorder %s32, 1
      %s617 = scalar_select %p616, %s32, 1
      %s618 = scalar_lea.vmem %s5, %s617
      %p619 = pneg %p180
      %p620 = pneg %p177
      %p621 = scmp.lt.s32.totalorder %s32, 1
      %s622 = scalar_select %p621, %s32, 1
      %s623 = smul.addr %s622, 4
      %s624 = smul.addr %s623, 8
      %s625 = scalar_lea.vmem %s6, %s624
      %p626 = pneg %p206
      %p627 = pneg %p203
      %p628 = scmp.lt.s32.totalorder %s32, 1
      %s629 = scalar_select %p628, %s32, 1
      %s630 = scalar_lea.vmem %s7, %s629
      %p631 = pneg %p232
      %p632 = pneg %p229
      %p633 = scmp.lt.s32.totalorder %s32, 1
      %s634 = scalar_select %p633, %s32, 1
      %s635 = scalar_lea.vmem %s8, %s634
      %p636 = pneg %p258
      %p637 = pneg %p255
      %p638 = scmp.lt.s32.totalorder %s32, 1
      %s639 = scalar_select %p638, %s32, 1
      %s640 = scalar_lea.vmem %s9, %s639
      %p641 = pneg %p284
      %p642 = pneg %p281
      %p643 = scmp.lt.s32.totalorder %s32, 1
      %s644 = scalar_select %p643, %s32, 1
      %s645 = smul.addr %s644, 4
      %s646 = smul.addr %s645, 8
      %s647 = scalar_lea.vmem %s10, %s646
      %p648 = pneg %p310
      %p649 = pneg %p307
      %p650 = scmp.lt.s32.totalorder %s32, 1
      %s651 = scalar_select %p650, %s32, 1
      %s652 = scalar_lea.vmem %s11, %s651
      %p653 = pneg %p336
      %p654 = pneg %p333
      %p655 = scmp.lt.s32.totalorder %s32, 1
      %s656 = scalar_select %p655, %s32, 1
      %s657 = smul.addr %s656, 8
      %s658 = smul.addr %s657, 8
      %s659 = scalar_lea.vmem %s12, %s658
      %p660 = pneg %p362
      %p661 = pneg %p359
      %p662 = scmp.lt.s32.totalorder %s32, 1
      %s663 = scalar_select %p662, %s32, 1
      %s664 = scalar_lea.vmem %s13, %s663
      %p665 = pneg %p388
      %p666 = pneg %p385
      %p667 = scmp.lt.s32.totalorder %s32, 1
      %s668 = scalar_select %p667, %s32, 1
      %s669 = scalar_lea.vmem %s14, %s668
      %p670 = pneg %p414
      %p671 = pneg %p411
      %p672 = scmp.lt.s32.totalorder %s32, 1
      %s673 = scalar_select %p672, %s32, 1
      %s674 = scalar_lea.vmem %s15, %s673
      %p675 = pneg %p440
      %p676 = pneg %p437
      %p677 = pneg %p466
      %p678 = pneg %p463
      %s679 = smul.u32 2, %s31
      %p680 = scmp.lt.s32.totalorder %s679, 3
      %s681 = scalar_select %p680, %s679, 3
      %s682 = smul.addr %s681, 8
      %s683 = scalar_lea.vmem %s16, %s682
      %s684 = smul.u32 2, %s31
      %p685 = scmp.lt.s32.totalorder %s684, 3
      %s686 = scalar_select %p685, %s684, 3
      %s687 = smul.addr %s686, 8
      %s688 = scalar_lea.vmem %s0, %s687
      %s689 = smul.u32 2, %s31
      %p690 = scmp.lt.s32.totalorder %s31, 1
      %s691 = scalar_select %p690, %s31, 1
      %s692 = scalar_lea.vmem %s1, %s691
      %p693 = scmp.lt.s32.totalorder %s32, 1
      %s694 = scalar_select %p693, %s32, 1
      %s695 = smul.addr %s694, 4
      %s696 = smul.addr %s695, 8
      %s697 = scalar_lea.vmem %s4, %s696
      %p698 = scmp.lt.s32.totalorder %s32, 1
      %s699 = scalar_select %p698, %s32, 1
      %s700 = scalar_lea.vmem %s5, %s699
      %p701 = scmp.lt.s32.totalorder %s32, 1
      %s702 = scalar_select %p701, %s32, 1
      %s703 = smul.addr %s702, 4
      %s704 = smul.addr %s703, 8
      %s705 = scalar_lea.vmem %s6, %s704
      %p706 = scmp.lt.s32.totalorder %s32, 1
      %s707 = scalar_select %p706, %s32, 1
      %s708 = scalar_lea.vmem %s7, %s707
      %p709 = scmp.lt.s32.totalorder %s32, 1
      %s710 = scalar_select %p709, %s32, 1
      %s711 = scalar_lea.vmem %s8, %s710
      %p712 = scmp.lt.s32.totalorder %s32, 1
      %s713 = scalar_select %p712, %s32, 1
      %s714 = scalar_lea.vmem %s9, %s713
      %p715 = scmp.lt.s32.totalorder %s32, 1
      %s716 = scalar_select %p715, %s32, 1
      %s717 = smul.addr %s716, 4
      %s718 = smul.addr %s717, 8
      %s719 = scalar_lea.vmem %s10, %s718
      %p720 = scmp.lt.s32.totalorder %s32, 1
      %s721 = scalar_select %p720, %s32, 1
      %s722 = scalar_lea.vmem %s11, %s721
      %p723 = scmp.lt.s32.totalorder %s32, 1
      %s724 = scalar_select %p723, %s32, 1
      %s725 = smul.addr %s724, 8
      %s726 = smul.addr %s725, 8
      %s727 = scalar_lea.vmem %s12, %s726
      %p728 = scmp.lt.s32.totalorder %s32, 1
      %s729 = scalar_select %p728, %s32, 1
      %s730 = scalar_lea.vmem %s13, %s729
      %p731 = scmp.lt.s32.totalorder %s32, 1
      %s732 = scalar_select %p731, %s32, 1
      %s733 = scalar_lea.vmem %s14, %s732
      %p734 = scmp.lt.s32.totalorder %s32, 1
      %s735 = scalar_select %p734, %s32, 1
      %s736 = scalar_lea.vmem %s15, %s735
      %s737 = smul.u32 2, %s31
      %p738 = scmp.lt.s32.totalorder %s737, 3
      %s739 = scalar_select %p738, %s737, 3
      %s740 = smul.addr %s739, 8
      %s741 = scalar_lea.vmem %s16, %s740
      %s742 = smul.u32 2, %s31
      %p743 = scmp.eq.s32.totalorder %s32, 0
      // Predicated region
      $region85: #{bert_for_fit.2} parent=83 // pred_check
        %p744 = pneg %p743
      $region86: #{bert_for_fit.2} parent=83 // pred_check_branch
        %746 = sbr.rel (%p744) target = $region88
      $region87: #{bert_for_fit.2} parent=83 // pred_region
        %v747 = vld [vmem:[%s688] sm:$0xff]
        %v748 = vld [vmem:[%s688 + $0x8] sm:$0xff]
        %v749 = vld [vmem:[%s2] sm:$0x1]
        %v750 = vld [vmem:[%s3] sm:$0x1]
        %vm751 = vcmask 261120
        %v752 = vsel %vm751, %v747, 0.0
        %753 = vadd.xlane.f32.xlu0 %v752
        %v754 = vpop.xlane.xlu0 %753
        %v755 = vsel %vm751, %v748, 0.0
        %756 = vadd.xlane.f32.xlu0 %v755
        %v757 = vpop.xlane.xlu0 %756
        %v758 = vrcp.pop 32.0
        %v759 = vmul.f32 32.0, %v758
        %v760 = vsub.f32 1.0, %v759
        %v761 = vmul.f32 %v758, %v760
        %v762 = vadd.f32 %v758, %v761
        %vm763 = vweird.f32 %v758
        %v764 = vsel %vm763, %v758, %v762
        %v765 = vmul.f32 %v754, %v764
        %v766 = vmul.f32 %v757, %v764
        %v767 = vsub.f32 %v747, %v765
        %v768 = vsub.f32 %v748, %v766
        %v769 = vmul.f32 %v767, %v767
        %v770 = vmul.f32 %v768, %v768
        %v771 = vsel %vm751, %v769, 0.0
        %772 = vadd.xlane.f32.xlu0 %v771
        %v773 = vpop.xlane.xlu0 %772
        %v774 = vsel %vm751, %v770, 0.0
        %775 = vadd.xlane.f32.xlu0 %v774
        %v776 = vpop.xlane.xlu0 %775
        %v777 = vmul.f32 %v773, %v764
        %v778 = vmul.f32 %v776, %v764
        %v779 = vadd.f32 %v777, 1e-12
        %v780 = vadd.f32 %v778, 1e-12
        %v781 = vrsqrt.pop %v779
        %v782 = vmul.f32 %v781, %v779
        %v783 = vmul.f32 %v782, %v781
        %v784 = vmul.f32 0.5, %v783
        %v785 = vsub.f32 1.5, %v784
        %v786 = vmul.f32 %v781, %v785
        %vm787 = vweird.f32 %v779
        %vm788 = vweird.f32 %v781
        %vm789 = vmor %vm787, %vm788
        %v790 = vsel %vm789, %v781, %v786
        %v791 = vrsqrt.pop %v780
        %v792 = vmul.f32 %v791, %v780
        %v793 = vmul.f32 %v792, %v791
        %v794 = vmul.f32 0.5, %v793
        %v795 = vsub.f32 1.5, %v794
        %v796 = vmul.f32 %v791, %v795
        %vm797 = vweird.f32 %v780
        %vm798 = vweird.f32 %v791
        %vm799 = vmor %vm797, %vm798
        %v800 = vsel %vm799, %v791, %v796
        %v801 = vmul.f32 %v767, %v790
        %v802 = vmul.f32 %v768, %v800
        %v804 = vperm.slane %v749, 0
        %v806 = vmul.f32 %v801, %v804
        %v807 = vmul.f32 %v802, %v804
        %v809 = vperm.slane %v750, 0
        %v811 = vadd.f32 %v806, %v809
        %v812 = vadd.f32 %v807, %v809
        %813 = vst.msk [vmem:[%s741] sm:$0xff] %vm751, %v811
        %814 = vst.msk [vmem:[%s741 + $0x8] sm:$0xff] %vm751, %v812
      $region88: #{bert_for_fit.2} parent=83 // pred_fallthru
        _
      %v815 = vld [vmem:[%s741] sm:$0xff]
      %v816 = vld [vmem:[%s741 + $0x8] sm:$0xff]
      %v817 = vld [vmem:[%s697] sm:$0xff]
      %v818 = vld [vmem:[%s697 + $0x8] sm:$0xff]
      %v819 = vld [vmem:[%s697 + $0x10] sm:$0xff]
      %v820 = vld [vmem:[%s697 + $0x18] sm:$0xff]
      %v821 = vld [vmem:[%s700] sm:$0x1]
      %v823 = vperm.slane %v821, 0
      %vm825 = vcmask 261120
      %v827 = vsel %vm825, %v815, 0
      %v830 = vsel %vm825, %v816, 0
      %832 = vmatpush.msra.mxu0 0.0
      %833 = vmatpush.msra.mxu0 0.0
      %834 = vmatpush.msra.mxu0 0.0
      %835 = vmatpush.msra.mxu0 0.0
      %836 = vmatpush.msra.mxu0 0.0
      %837 = vmatpush.msra.mxu0 0.0
      %838 = vmatpush.msra.mxu0 0.0
      %839 = vmatpush.msra.mxu0 0.0
      %840 = vmatpush.msra.mxu0 0.0
      %841 = vmatpush.msra.mxu0 0.0
      %842 = vmatpush.msra.mxu0 0.0
      %843 = vmatpush.msra.mxu0 0.0
      %844 = vmatpush.msra.mxu0 %v820
      %845 = vmatpush.msra.mxu0 %v819
      %846 = vmatpush.msra.mxu0 %v818
      %847 = vmatpush.msra.mxu0 %v817
      %848 = vmatmul.f32.gmra.mxu0 %v827
      %v849 = vpop.f32.mrf.mxu0
      %v850 = vadd.f32 %v823, %v849
      %851 = vmatmul.f32.gmra.mxu0 %v830
      %v852 = vpop.f32.mrf.mxu0
      %v853 = vadd.f32 %v823, %v852
      %854 = vdwg.mxu0
      %v855 = vld [vmem:[%s692] sm:$0x1]
      %858 = vrot.lane.b32.xlu0 %v850, 96
      %v859 = vpop.permute.xlu0 %858
      %860 = vrot.lane.b32.xlu0 %v853, 96
      %v861 = vpop.permute.xlu0 %860
      %vm862 = vcmask 130048
      %v863 = vsel %vm862, %v850, 0
      %v865 = vsel %vm862, %v853, 0
      %v867 = vsel %vm862, %v859, 0
      %v869 = vsel %vm862, %v861, 0
      %871 = vmatpush.xpose.msra.mxu0 0.0
      %872 = vmatpush.xpose.msra.mxu0 0.0
      %873 = vmatpush.xpose.msra.mxu0 0.0
      %874 = vmatpush.xpose.msra.mxu0 0.0
      %875 = vmatpush.xpose.msra.mxu0 0.0
      %876 = vmatpush.xpose.msra.mxu0 0.0
      %877 = vmatpush.xpose.msra.mxu0 0.0
      %878 = vmatpush.xpose.msra.mxu0 0.0
      %879 = vmatpush.xpose.msra.mxu0 0.0
      %880 = vmatpush.xpose.msra.mxu0 0.0
      %881 = vmatpush.xpose.msra.mxu0 0.0
      %882 = vmatpush.xpose.msra.mxu0 0.0
      %883 = vmatpush.xpose.msra.mxu0 0.0
      %884 = vmatpush.xpose.msra.mxu0 0.0
      %885 = vmatpush.xpose.msra.mxu0 %v869
      %886 = vmatpush.xpose.msra.mxu0 %v867
      %887 = vmatmul.f32.gmra.mxu0 %v863
      %v888 = vpop.f32.mrf.mxu0
      %v889 = vadd.f32 0.0, %v888
      %890 = vmatmul.f32.gmra.mxu0 %v865
      %v891 = vpop.f32.mrf.mxu0
      %v892 = vadd.f32 0.0, %v891
      %893 = vdwg.mxu0
      %v894 = vmul.f32 %v889, 0.25
      %v895 = vmul.f32 %v892, 0.25
      %v897 = vperm.slane %v855, 0
      %v899 = vadd.f32 %v894, %v897
      %v900 = vadd.f32 %v895, %v897
      %v901 = vsel %vm862, %v899, -inf
      %902 = vmax.xlane.f32.xlu0 %v901
      %v903 = vpop.xlane.xlu0 %902
      %v904 = vsel %vm862, %v900, -inf
      %905 = vmax.xlane.f32.xlu0 %v904
      %v906 = vpop.xlane.xlu0 %905
      %v907 = vsub.f32 %v899, %v903
      %v908 = vsub.f32 %v900, %v906
      %v909 = vmul.f32 %v907, 1.442695
      %v910 = vpow.pop %v909
      %v911 = vmul.f32 %v908, 1.442695
      %v912 = vpow.pop %v911
      %v913 = vsel %vm862, %v910, 0.0
      %914 = vadd.xlane.f32.xlu0 %v913
      %v915 = vpop.xlane.xlu0 %914
      %v916 = vsel %vm862, %v912, 0.0
      %917 = vadd.xlane.f32.xlu0 %v916
      %v918 = vpop.xlane.xlu0 %917
      %v919 = vrcp.pop %v915
      %v920 = vrcp.pop %v918
      %v921 = vmul.f32 %v910, %v919
      %v922 = vmul.f32 %v912, %v920
      %923 = vrot.lane.b32.xlu0 %v850, 64
      %v924 = vpop.permute.xlu0 %923
      %925 = vrot.lane.b32.xlu0 %v853, 64
      %v926 = vpop.permute.xlu0 %925
      %v930 = vsel %vm862, %v921, 0
      %v933 = vsel %vm862, %v922, 0
      %935 = vmatpush.msra.mxu0 0.0
      %936 = vmatpush.msra.mxu0 0.0
      %937 = vmatpush.msra.mxu0 0.0
      %938 = vmatpush.msra.mxu0 0.0
      %939 = vmatpush.msra.mxu0 0.0
      %940 = vmatpush.msra.mxu0 0.0
      %941 = vmatpush.msra.mxu0 0.0
      %942 = vmatpush.msra.mxu0 0.0
      %943 = vmatpush.msra.mxu0 0.0
      %944 = vmatpush.msra.mxu0 0.0
      %945 = vmatpush.msra.mxu0 0.0
      %946 = vmatpush.msra.mxu0 0.0
      %947 = vmatpush.msra.mxu0 0.0
      %948 = vmatpush.msra.mxu0 0.0
      %949 = vmatpush.msra.mxu0 %v926
      %950 = vmatpush.msra.mxu0 %v924
      %951 = vmatmul.f32.gmra.mxu0 %v930
      %v952 = vpop.f32.mrf.mxu0
      %v953 = vadd.f32 0.0, %v952
      %954 = vmatmul.f32.gmra.mxu0 %v933
      %v955 = vpop.f32.mrf.mxu0
      %v956 = vadd.f32 0.0, %v955
      %957 = vdwg.mxu0
      %958 = vrot.lane.b32.xlu0 %v850, 112
      %v959 = vpop.permute.xlu0 %958
      %960 = vrot.lane.b32.xlu0 %v853, 112
      %v961 = vpop.permute.xlu0 %960
      %962 = vrot.lane.b32.xlu0 %v850, 80
      %v963 = vpop.permute.xlu0 %962
      %964 = vrot.lane.b32.xlu0 %v853, 80
      %v965 = vpop.permute.xlu0 %964
      %v966 = vsel %vm862, %v959, 0
      %v968 = vsel %vm862, %v961, 0
      %v970 = vsel %vm862, %v963, 0
      %v972 = vsel %vm862, %v965, 0
      %974 = vmatpush.xpose.msra.mxu0 0.0
      %975 = vmatpush.xpose.msra.mxu0 0.0
      %976 = vmatpush.xpose.msra.mxu0 0.0
      %977 = vmatpush.xpose.msra.mxu0 0.0
      %978 = vmatpush.xpose.msra.mxu0 0.0
      %979 = vmatpush.xpose.msra.mxu0 0.0
      %980 = vmatpush.xpose.msra.mxu0 0.0
      %981 = vmatpush.xpose.msra.mxu0 0.0
      %982 = vmatpush.xpose.msra.mxu0 0.0
      %983 = vmatpush.xpose.msra.mxu0 0.0
      %984 = vmatpush.xpose.msra.mxu0 0.0
      %985 = vmatpush.xpose.msra.mxu0 0.0
      %986 = vmatpush.xpose.msra.mxu0 0.0
      %987 = vmatpush.xpose.msra.mxu0 0.0
      %988 = vmatpush.xpose.msra.mxu0 %v972
      %989 = vmatpush.xpose.msra.mxu0 %v970
      %990 = vmatmul.f32.gmra.mxu0 %v966
      %v991 = vpop.f32.mrf.mxu0
      %v992 = vadd.f32 0.0, %v991
      %993 = vmatmul.f32.gmra.mxu0 %v968
      %v994 = vpop.f32.mrf.mxu0
      %v995 = vadd.f32 0.0, %v994
      %996 = vdwg.mxu0
      %v997 = vmul.f32 %v992, 0.25
      %v998 = vmul.f32 %v995, 0.25
      %v999 = vadd.f32 %v997, %v897
      %v1000 = vadd.f32 %v998, %v897
      %v1001 = vsel %vm862, %v999, -inf
      %1002 = vmax.xlane.f32.xlu0 %v1001
      %v1003 = vpop.xlane.xlu0 %1002
      %v1004 = vsel %vm862, %v1000, -inf
      %1005 = vmax.xlane.f32.xlu0 %v1004
      %v1006 = vpop.xlane.xlu0 %1005
      %v1007 = vsub.f32 %v999, %v1003
      %v1008 = vsub.f32 %v1000, %v1006
      %v1009 = vmul.f32 %v1007, 1.442695
      %v1010 = vpow.pop %v1009
      %v1011 = vmul.f32 %v1008, 1.442695
      %v1012 = vpow.pop %v1011
      %v1013 = vsel %vm862, %v1010, 0.0
      %1014 = vadd.xlane.f32.xlu0 %v1013
      %v1015 = vpop.xlane.xlu0 %1014
      %v1016 = vsel %vm862, %v1012, 0.0
      %1017 = vadd.xlane.f32.xlu0 %v1016
      %v1018 = vpop.xlane.xlu0 %1017
      %v1019 = vrcp.pop %v1015
      %v1020 = vrcp.pop %v1018
      %v1021 = vmul.f32 %v1010, %v1019
      %v1022 = vmul.f32 %v1012, %v1020
      %1023 = vrot.lane.b32.xlu0 %v850, 48
      %v1024 = vpop.permute.xlu0 %1023
      %1025 = vrot.lane.b32.xlu0 %v853, 48
      %v1026 = vpop.permute.xlu0 %1025
      %v1030 = vsel %vm862, %v1021, 0
      %v1033 = vsel %vm862, %v1022, 0
      %1035 = vmatpush.msra.mxu0 0.0
      %1036 = vmatpush.msra.mxu0 0.0
      %1037 = vmatpush.msra.mxu0 0.0
      %1038 = vmatpush.msra.mxu0 0.0
      %1039 = vmatpush.msra.mxu0 0.0
      %1040 = vmatpush.msra.mxu0 0.0
      %1041 = vmatpush.msra.mxu0 0.0
      %1042 = vmatpush.msra.mxu0 0.0
      %1043 = vmatpush.msra.mxu0 0.0
      %1044 = vmatpush.msra.mxu0 0.0
      %1045 = vmatpush.msra.mxu0 0.0
      %1046 = vmatpush.msra.mxu0 0.0
      %1047 = vmatpush.msra.mxu0 0.0
      %1048 = vmatpush.msra.mxu0 0.0
      %1049 = vmatpush.msra.mxu0 %v1026
      %1050 = vmatpush.msra.mxu0 %v1024
      %1051 = vmatmul.f32.gmra.mxu0 %v1030
      %v1052 = vpop.f32.mrf.mxu0
      %v1053 = vadd.f32 0.0, %v1052
      %1054 = vmatmul.f32.gmra.mxu0 %v1033
      %v1055 = vpop.f32.mrf.mxu0
      %v1056 = vadd.f32 0.0, %v1055
      %1057 = vdwg.mxu0
      %1060 = vrot.lane.b32.xlu0 %v1053, 16
      %v1061 = vpop.permute.xlu0 %1060
      %1062 = vrot.lane.b32.xlu0 %v1056, 16
      %v1063 = vpop.permute.xlu0 %1062
      %v1066 = vsel %vm862, %v953, %v1061
      %v1067 = vsel %vm862, %v956, %v1063
      %v1068 = vld [vmem:[%s705] sm:$0xff]
      %v1069 = vld [vmem:[%s705 + $0x8] sm:$0xff]
      %v1070 = vld [vmem:[%s705 + $0x10] sm:$0xff]
      %v1071 = vld [vmem:[%s705 + $0x18] sm:$0xff]
      %v1072 = vld [vmem:[%s708] sm:$0x1]
      %v1074 = vperm.slane %v1072, 0
      %v1077 = vsel %vm825, %v1066, 0
      %v1080 = vsel %vm825, %v1067, 0
      %1082 = vmatpush.msra.mxu0 0.0
      %1083 = vmatpush.msra.mxu0 0.0
      %1084 = vmatpush.msra.mxu0 0.0
      %1085 = vmatpush.msra.mxu0 0.0
      %1086 = vmatpush.msra.mxu0 0.0
      %1087 = vmatpush.msra.mxu0 0.0
      %1088 = vmatpush.msra.mxu0 0.0
      %1089 = vmatpush.msra.mxu0 0.0
      %1090 = vmatpush.msra.mxu0 0.0
      %1091 = vmatpush.msra.mxu0 0.0
      %1092 = vmatpush.msra.mxu0 0.0
      %1093 = vmatpush.msra.mxu0 0.0
      %1094 = vmatpush.msra.mxu0 %v1071
      %1095 = vmatpush.msra.mxu0 %v1070
      %1096 = vmatpush.msra.mxu0 %v1069
      %1097 = vmatpush.msra.mxu0 %v1068
      %1098 = vmatmul.f32.gmra.mxu0 %v1077
      %v1099 = vpop.f32.mrf.mxu0
      %v1100 = vadd.f32 %v1074, %v1099
      %1101 = vmatmul.f32.gmra.mxu0 %v1080
      %v1102 = vpop.f32.mrf.mxu0
      %v1103 = vadd.f32 %v1074, %v1102
      %1104 = vdwg.mxu0
      %v1105 = vadd.f32 %v1100, %v815
      %v1106 = vadd.f32 %v1103, %v816
      %v1107 = vld [vmem:[%s711] sm:$0x1]
      %v1108 = vld [vmem:[%s714] sm:$0x1]
      %v1109 = vsel %vm825, %v1105, 0.0
      %1110 = vadd.xlane.f32.xlu0 %v1109
      %v1111 = vpop.xlane.xlu0 %1110
      %v1112 = vsel %vm825, %v1106, 0.0
      %1113 = vadd.xlane.f32.xlu0 %v1112
      %v1114 = vpop.xlane.xlu0 %1113
      %v1115 = vrcp.pop 32.0
      %v1116 = vmul.f32 32.0, %v1115
      %v1117 = vsub.f32 1.0, %v1116
      %v1118 = vmul.f32 %v1115, %v1117
      %v1119 = vadd.f32 %v1115, %v1118
      %vm1120 = vweird.f32 %v1115
      %v1121 = vsel %vm1120, %v1115, %v1119
      %v1122 = vmul.f32 %v1111, %v1121
      %v1123 = vmul.f32 %v1114, %v1121
      %v1124 = vsub.f32 %v1105, %v1122
      %v1125 = vsub.f32 %v1106, %v1123
      %v1126 = vmul.f32 %v1124, %v1124
      %v1127 = vmul.f32 %v1125, %v1125
      %v1128 = vsel %vm825, %v1126, 0.0
      %1129 = vadd.xlane.f32.xlu0 %v1128
      %v1130 = vpop.xlane.xlu0 %1129
      %v1131 = vsel %vm825, %v1127, 0.0
      %1132 = vadd.xlane.f32.xlu0 %v1131
      %v1133 = vpop.xlane.xlu0 %1132
      %v1134 = vmul.f32 %v1130, %v1121
      %v1135 = vmul.f32 %v1133, %v1121
      %v1136 = vadd.f32 %v1134, 1e-12
      %v1137 = vadd.f32 %v1135, 1e-12
      %v1138 = vrsqrt.pop %v1136
      %v1139 = vmul.f32 %v1138, %v1136
      %v1140 = vmul.f32 %v1139, %v1138
      %v1141 = vmul.f32 0.5, %v1140
      %v1142 = vsub.f32 1.5, %v1141
      %v1143 = vmul.f32 %v1138, %v1142
      %vm1144 = vweird.f32 %v1136
      %vm1145 = vweird.f32 %v1138
      %vm1146 = vmor %vm1144, %vm1145
      %v1147 = vsel %vm1146, %v1138, %v1143
      %v1148 = vrsqrt.pop %v1137
      %v1149 = vmul.f32 %v1148, %v1137
      %v1150 = vmul.f32 %v1149, %v1148
      %v1151 = vmul.f32 0.5, %v1150
      %v1152 = vsub.f32 1.5, %v1151
      %v1153 = vmul.f32 %v1148, %v1152
      %vm1154 = vweird.f32 %v1137
      %vm1155 = vweird.f32 %v1148
      %vm1156 = vmor %vm1154, %vm1155
      %v1157 = vsel %vm1156, %v1148, %v1153
      %v1158 = vmul.f32 %v1124, %v1147
      %v1159 = vmul.f32 %v1125, %v1157
      %v1161 = vperm.slane %v1107, 0
      %v1163 = vmul.f32 %v1158, %v1161
      %v1164 = vmul.f32 %v1159, %v1161
      %v1166 = vperm.slane %v1108, 0
      %v1168 = vadd.f32 %v1163, %v1166
      %v1169 = vadd.f32 %v1164, %v1166
      %v1170 = vld [vmem:[%s719] sm:$0xff]
      %v1171 = vld [vmem:[%s719 + $0x8] sm:$0xff]
      %v1172 = vld [vmem:[%s719 + $0x10] sm:$0xff]
      %v1173 = vld [vmem:[%s719 + $0x18] sm:$0xff]
      %v1174 = vld [vmem:[%s722] sm:$0x1]
      %v1176 = vperm.slane %v1174, 0
      %v1179 = vsel %vm825, %v1168, 0
      %v1182 = vsel %vm825, %v1169, 0
      %1184 = vmatpush.msra.mxu0 0.0
      %1185 = vmatpush.msra.mxu0 0.0
      %1186 = vmatpush.msra.mxu0 0.0
      %1187 = vmatpush.msra.mxu0 0.0
      %1188 = vmatpush.msra.mxu0 0.0
      %1189 = vmatpush.msra.mxu0 0.0
      %1190 = vmatpush.msra.mxu0 0.0
      %1191 = vmatpush.msra.mxu0 0.0
      %1192 = vmatpush.msra.mxu0 0.0
      %1193 = vmatpush.msra.mxu0 0.0
      %1194 = vmatpush.msra.mxu0 0.0
      %1195 = vmatpush.msra.mxu0 0.0
      %1196 = vmatpush.msra.mxu0 %v1173
      %1197 = vmatpush.msra.mxu0 %v1172
      %1198 = vmatpush.msra.mxu0 %v1171
      %1199 = vmatpush.msra.mxu0 %v1170
      %1200 = vmatmul.f32.gmra.mxu0 %v1179
      %v1201 = vpop.f32.mrf.mxu0
      %v1202 = vadd.f32 %v1176, %v1201
      %1203 = vmatmul.f32.gmra.mxu0 %v1182
      %v1204 = vpop.f32.mrf.mxu0
      %v1205 = vadd.f32 %v1176, %v1204
      %1206 = vdwg.mxu0
      %v1207 = vmul.f32 %v1202, 0.5
      %v1208 = vmul.f32 %v1205, 0.5
      %v1209 = vmul.f32 %v1202, 0.044715
      %v1210 = vmul.f32 %v1205, 0.044715
      %v1211 = vmul.f32 %v1209, %v1202
      %v1212 = vmul.f32 %v1210, %v1205
      %v1213 = vmul.f32 %v1211, %v1202
      %v1214 = vmul.f32 %v1212, %v1205
      %v1215 = vadd.f32 %v1202, %v1213
      %v1216 = vadd.f32 %v1205, %v1214
      %v1217 = vmul.f32 %v1215, 0.7978846
      %v1218 = vmul.f32 %v1216, 0.7978846
      %v1219 = vtanh.pop %v1217
      %v1220 = vtanh.pop %v1218
      %v1221 = vadd.f32 %v1219, 1.0
      %v1222 = vadd.f32 %v1220, 1.0
      %v1223 = vmul.f32 %v1207, %v1221
      %v1224 = vmul.f32 %v1208, %v1222
      %v1225 = vld [vmem:[%s727] sm:$0xff]
      %v1226 = vld [vmem:[%s727 + $0x8] sm:$0xff]
      %v1227 = vld [vmem:[%s727 + $0x10] sm:$0xff]
      %v1228 = vld [vmem:[%s727 + $0x18] sm:$0xff]
      %v1229 = vld [vmem:[%s727 + $0x20] sm:$0xff]
      %v1230 = vld [vmem:[%s727 + $0x28] sm:$0xff]
      %v1231 = vld [vmem:[%s727 + $0x30] sm:$0xff]
      %v1232 = vld [vmem:[%s727 + $0x38] sm:$0xff]
      %v1233 = vld [vmem:[%s730] sm:$0x1]
      %v1235 = vperm.slane %v1233, 0
      %vm1237 = vcmask 523264
      %v1239 = vsel %vm1237, %v1223, 0
      %v1242 = vsel %vm1237, %v1224, 0
      %1244 = vmatpush.msra.mxu0 0.0
      %1245 = vmatpush.msra.mxu0 0.0
      %1246 = vmatpush.msra.mxu0 0.0
      %1247 = vmatpush.msra.mxu0 0.0
      %1248 = vmatpush.msra.mxu0 0.0
      %1249 = vmatpush.msra.mxu0 0.0
      %1250 = vmatpush.msra.mxu0 0.0
      %1251 = vmatpush.msra.mxu0 0.0
      %1252 = vmatpush.msra.mxu0 %v1232
      %1253 = vmatpush.msra.mxu0 %v1231
      %1254 = vmatpush.msra.mxu0 %v1230
      %1255 = vmatpush.msra.mxu0 %v1229
      %1256 = vmatpush.msra.mxu0 %v1228
      %1257 = vmatpush.msra.mxu0 %v1227
      %1258 = vmatpush.msra.mxu0 %v1226
      %1259 = vmatpush.msra.mxu0 %v1225
      %1260 = vmatmul.f32.gmra.mxu0 %v1239
      %v1261 = vpop.f32.mrf.mxu0
      %v1262 = vadd.f32 %v1235, %v1261
      %1263 = vmatmul.f32.gmra.mxu0 %v1242
      %v1264 = vpop.f32.mrf.mxu0
      %v1265 = vadd.f32 %v1235, %v1264
      %1266 = vdwg.mxu0
      %v1267 = vadd.f32 %v1262, %v1168
      %v1268 = vadd.f32 %v1265, %v1169
      %v1269 = vld [vmem:[%s733] sm:$0x1]
      %v1270 = vld [vmem:[%s736] sm:$0x1]
      %v1271 = vsel %vm825, %v1267, 0.0
      %1272 = vadd.xlane.f32.xlu0 %v1271
      %v1273 = vpop.xlane.xlu0 %1272
      %v1274 = vsel %vm825, %v1268, 0.0
      %1275 = vadd.xlane.f32.xlu0 %v1274
      %v1276 = vpop.xlane.xlu0 %1275
      %v1277 = vmul.f32 %v1273, %v1121
      %v1278 = vmul.f32 %v1276, %v1121
      %v1279 = vsub.f32 %v1267, %v1277
      %v1280 = vsub.f32 %v1268, %v1278
      %v1281 = vmul.f32 %v1279, %v1279
      %v1282 = vmul.f32 %v1280, %v1280
      %v1283 = vsel %vm825, %v1281, 0.0
      %1284 = vadd.xlane.f32.xlu0 %v1283
      %v1285 = vpop.xlane.xlu0 %1284
      %v1286 = vsel %vm825, %v1282, 0.0
      %1287 = vadd.xlane.f32.xlu0 %v1286
      %v1288 = vpop.xlane.xlu0 %1287
      %v1289 = vmul.f32 %v1285, %v1121
      %v1290 = vmul.f32 %v1288, %v1121
      %v1291 = vadd.f32 %v1289, 1e-12
      %v1292 = vadd.f32 %v1290, 1e-12
      %v1293 = vrsqrt.pop %v1291
      %v1294 = vmul.f32 %v1293, %v1291
      %v1295 = vmul.f32 %v1294, %v1293
      %v1296 = vmul.f32 0.5, %v1295
      %v1297 = vsub.f32 1.5, %v1296
      %v1298 = vmul.f32 %v1293, %v1297
      %vm1299 = vweird.f32 %v1291
      %vm1300 = vweird.f32 %v1293
      %vm1301 = vmor %vm1299, %vm1300
      %v1302 = vsel %vm1301, %v1293, %v1298
      %v1303 = vrsqrt.pop %v1292
      %v1304 = vmul.f32 %v1303, %v1292
      %v1305 = vmul.f32 %v1304, %v1303
      %v1306 = vmul.f32 0.5, %v1305
      %v1307 = vsub.f32 1.5, %v1306
      %v1308 = vmul.f32 %v1303, %v1307
      %vm1309 = vweird.f32 %v1292
      %vm1310 = vweird.f32 %v1303
      %vm1311 = vmor %vm1309, %vm1310
      %v1312 = vsel %vm1311, %v1303, %v1308
      %v1313 = vmul.f32 %v1279, %v1302
      %v1314 = vmul.f32 %v1280, %v1312
      %v1316 = vperm.slane %v1269, 0
      %v1318 = vmul.f32 %v1313, %v1316
      %v1319 = vmul.f32 %v1314, %v1316
      %v1321 = vperm.slane %v1270, 0
      %v1323 = vadd.f32 %v1318, %v1321
      %v1324 = vadd.f32 %v1319, %v1321
      %1325 = vst.msk [vmem:[%s741] sm:$0xff] %vm825, %v1323
      %1326 = vst.msk [vmem:[%s741 + $0x8] sm:$0xff] %vm825, %v1324
      %s1327 = smul.u32 2, %s31
      %p1328 = scmp.lt.s32.totalorder %s1327, 3
      %s1329 = scalar_select %p1328, %s1327, 3
      %s1330 = smul.addr %s1329, 8
      %s1331 = scalar_lea.vmem %s16, %s1330
      // Predicated region
      $region89: #{bert_for_fit.2} parent=83 // pred_check
        %p1332 = pneg %p463
      $region90: #{bert_for_fit.2} parent=83 // pred_check_branch
        %1334 = sbr.rel (%p1332) target = $region92
      $region91: #{bert_for_fit.2} parent=83 // pred_region
        %s1335 = smul.u32 2, %s31
      $region92: #{bert_for_fit.2} parent=83 // pred_fallthru
        _
    $region84: #{bert_for_fit.2} parent=5 // pred_fallthru
      _
    %p1336 = scmp.le.s32.totalorder 2, %s22
    // Predicated region
    $region93: #{bert_for_fit.2} parent=5 // pred_check
      %p1337 = pneg %p1336
    $region94: #{bert_for_fit.2} parent=5 // pred_check_branch
      %1339 = sbr.rel (%p1337) target = $region96
    $region95: #{bert_for_fit.2} parent=5 // pred_region
      %s1340 = ssub.s32 %s22, 2
      // Predicated region
      $region97: #{bert_for_fit.2} parent=95 // pred_check
        %p1341 = pneg %p469
      $region98: #{bert_for_fit.2} parent=95 // pred_check_branch
        %1343 = sbr.rel (%p1341) target = $region100
      $region99: #{bert_for_fit.2} parent=95 // pred_region
        %s1344 = smul.u32 2, %s33
        %p1345 = scmp.lt.s32.totalorder %s1344, 3
        %s1346 = scalar_select %p1345, %s1344, 3
        %s1347 = smul.addr %s1346, 8
        %s1348 = scalar_lea.vmem %s16, %s1347
      $region100: #{bert_for_fit.2} parent=95 // pred_fallthru
        _
    $region96: #{bert_for_fit.2} parent=5 // pred_fallthru
      _
  $region6: #{bert_for_fit.2} parent=0 // loop_footer
    %s26 = sadd.s32 1, %s22
  $region7: #{bert_for_fit.2} parent=0 // loop_footer_branch
    %21 = sbr.rel target = $region3
  $region8: #{bert_for_fit.2} parent=0 // loop_exit
    _

</llo_original>
